<compile_context>
chip_gen: v5e
topology: v5e:2x2
jax: 0.10.0
libtpu: 0.0.40
codegen_flags: <defaults>
</compile_context>

<pallas_src>
import numpy as np
import jax
import jax.numpy as jnp
from jax.experimental import pallas as pl
from jax.experimental.pallas import tpu as pltpu


# ----------------------------- Pallas kernel --------------------------------
def _lstm_ed_kernel(x_ref,       # (T*B, I)  f32   time-major, flattened
                    wih_e_ref,   # (I, 4H)   bf16  encoder W_ih^T
                    whh_e_ref,   # (H, 4H)   bf16  encoder W_hh^T
                    b_e_ref,     # (1, 4H)   f32   encoder b_ih + b_hh
                    wfc_ref,     # (H, I)    bf16  fc weight^T
                    bfc_ref,     # (1, I)    f32   fc bias
                    wd_ref,      # (H+I, 4H) bf16  decoder W_ih^T (rows = [hidden | input])
                    b_d_ref,     # (1, 4H)   f32   decoder b_ih + b_hh
                    pred_ref):   # (B, T*I)  f32   out, lane-dense slab
    TB, I = x_ref.shape
    H = whh_e_ref.shape[0]
    H4 = 4 * H
    B = pred_ref.shape[0]
    T = TB // B
    bf16 = jnp.bfloat16

    # -------- loop-invariant reads / broadcasts (hoisted once) --------------
    whh_e = whh_e_ref[...]                                   # (H, 4H) bf16
    wd = wd_ref[...]                                         # (H+I, 4H) bf16
    wfc = wfc_ref[...]                                       # (H, I) bf16
    b_fc = jnp.broadcast_to(bfc_ref[...], (B, I))            # (B, I) f32
    b_d = jnp.broadcast_to(b_d_ref[...], (B, H4))            # (B, 4H) f32

    def fc_relu(h_b):  # h_b: (B, H) bf16 -> (B, I) f32; module's "tanh" is nn.ReLU
        return jnp.maximum(
            jnp.dot(h_b, wfc, preferred_element_type=jnp.float32) + b_fc, 0.0)

    # -------- encoder input projection hoisted out of the recurrence --------
    # One (T*B, I) @ (I, 4H) matmul + one bias broadcast, instead of per step.
    x_proj = jnp.dot(x_ref[...].astype(bf16), wih_e_ref[...],
                     preferred_element_type=jnp.float32)
    x_proj = x_proj + jnp.broadcast_to(b_e_ref[...], (TB, H4))   # (T*B, 4H) f32

    # -------- encoder recurrence (nn.LSTM), fully unrolled over T ------------
    h = jnp.zeros((B, H), jnp.float32)
    c = jnp.zeros((B, H), jnp.float32)
    for t in range(T):
        pre = (x_proj[t * B:(t + 1) * B, :]
               + jnp.dot(h.astype(bf16), whh_e,
                         preferred_element_type=jnp.float32))          # (B, 4H)
        # Full-vreg nonlinearities: one sigmoid + one tanh over (B, 4H)=(8,128).
        sig = jax.nn.sigmoid(pre)
        th = jnp.tanh(pre)
        i_g = sig[:, 0 * H:1 * H]          # PyTorch gate order: i, f, g, o
        f_g = sig[:, 1 * H:2 * H]
        g_g = th[:, 2 * H:3 * H]
        o_g = sig[:, 3 * H:4 * H]
        c = f_g * c + i_g * g_g
        h = o_g * jnp.tanh(c)

    # -------- first prediction ----------------------------------------------
    x_t = fc_relu(h.astype(bf16))                                      # (B, I) f32
    preds = [x_t]

    # -------- decoder loop: LSTMCell called with zero (h, c) every step ------
    # c0 == 0  =>  c_t = i*g (f-gate contributes nothing); W_hh only via bias.
    h_prev_b = h.astype(bf16)
    for _ in range(1, T):
        hx = jnp.concatenate([h_prev_b, x_t.astype(bf16)], axis=1)     # (B, H+I)
        pre = jnp.dot(hx, wd, preferred_element_type=jnp.float32) + b_d
        sig = jax.nn.sigmoid(pre)
        th = jnp.tanh(pre)
        i_g = sig[:, 0 * H:1 * H]
        g_g = th[:, 2 * H:3 * H]
        o_g = sig[:, 3 * H:4 * H]
        hd = o_g * jnp.tanh(i_g * g_g)
        h_prev_b = hd.astype(bf16)
        x_t = fc_relu(h_prev_b)
        preds.append(x_t)

    # -------- coalesced, lane-dense writeback: one (B, T*I)=(8,128) store ----
    pred_ref[...] = jnp.concatenate(preds, axis=1).astype(pred_ref.dtype)


# ------------------------------- wrapper -------------------------------------
def lstm_ed_forward(x_bti, params):
    """x_bti: (B, T, I) batch-first, like the PyTorch module. Returns (B, T, I)."""
    B, T, I = x_bti.shape
    bf = jnp.bfloat16
    # Time-major + flattened so the encoder input projection is one big matmul.
    x_flat = jnp.transpose(x_bti, (1, 0, 2)).reshape(T * B, I).astype(jnp.float32)

    vmem = pl.BlockSpec(memory_space=pltpu.MemorySpace.VMEM)
    pred_flat = pl.pallas_call(
        _lstm_ed_kernel,
        out_shape=jax.ShapeDtypeStruct((B, T * I), jnp.float32),
        in_specs=[vmem] * 8,
        out_specs=vmem,
    )(x_flat,
      params["wih_e_t"].astype(bf), params["whh_e_t"].astype(bf),
      params["b_e"].astype(jnp.float32),
      params["wfc_t"].astype(bf), params["b_fc"].astype(jnp.float32),
      params["wd_t"].astype(bf), params["b_d"].astype(jnp.float32))
    return pred_flat.reshape(B, T, I)


# ------------------------- deterministic parameter init ----------------------
def init_params(key, input_size, hidden_size):
    """PyTorch-style U(-1/sqrt(H), 1/sqrt(H)) init, deterministic from `key` (f32)."""
    bound = 1.0 / np.sqrt(hidden_size)
    keys = jax.random.split(key, 10)
    u = lambda k_, shape: jax.random.uniform(k_, shape, jnp.float32, -bound, bound)

    w_ih_e = u(keys[0], (4 * hidden_size, input_size))
    w_hh_e = u(keys[1], (4 * hidden_size, hidden_size))
    b_ih_e = u(keys[2], (4 * hidden_size,))
    b_hh_e = u(keys[3], (4 * hidden_size,))
    w_fc = u(keys[4], (input_size, hidden_size))
    b_fc = u(keys[5], (input_size,))
    w_ih_d = u(keys[6], (4 * hidden_size, hidden_size + input_size))
    _w_hh_d = u(keys[7], (4 * hidden_size, hidden_size))  # unused: decoder state is always zero
    b_ih_d = u(keys[8], (4 * hidden_size,))
    b_hh_d = u(keys[9], (4 * hidden_size,))

    return dict(
        wih_e_t=w_ih_e.T,                     # (I, 4H)
        whh_e_t=w_hh_e.T,                     # (H, 4H)
        b_e=(b_ih_e + b_hh_e)[None, :],       # (1, 4H)
        wfc_t=w_fc.T,                         # (H, I)
        b_fc=b_fc[None, :],                   # (1, I)
        wd_t=w_ih_d.T,                        # (H+I, 4H); rows match cat([hidden, x])
        b_d=(b_ih_d + b_hh_d)[None, :],       # (1, 4H)
    )


# ------------------------- pure-JAX reference (for checking) -----------------
def lstm_ed_reference(x, params, dot_dtype=jnp.float32):
    """Module semantics in plain JAX.  dot_dtype=bfloat16 mimics the kernel's
    bf16 matmul operands (f32 accumulation) for a matched-precision check."""
    B, T, I = x.shape
    H = params["whh_e_t"].shape[0]
    dd = dot_dtype

    def dot(a, b):
        return jnp.dot(a.astype(dd), b.astype(dd), preferred_element_type=jnp.float32)

    def split(pre):
        return (jax.nn.sigmoid(pre[:, :H]), jax.nn.sigmoid(pre[:, H:2 * H]),
                jnp.tanh(pre[:, 2 * H:3 * H]), jax.nn.sigmoid(pre[:, 3 * H:]))

    fc = lambda h: jnp.maximum(dot(h, params["wfc_t"]) + params["b_fc"], 0.0)

    h = jnp.zeros((B, H), jnp.float32)
    c = jnp.zeros((B, H), jnp.float32)
    for t in range(T):
        pre = dot(x[:, t], params["wih_e_t"]) + dot(h, params["whh_e_t"]) + params["b_e"]
        i_g, f_g, g_g, o_g = split(pre)
        c = f_g * c + i_g * g_g
        h = o_g * jnp.tanh(c)

    x_t = fc(h)
    preds = [x_t]
    h_prev = h
    for _ in range(1, T):
        hx = jnp.concatenate([h_prev, x_t], axis=1)
        pre = dot(hx, params["wd_t"]) + params["b_d"]
        i_g, f_g, g_g, o_g = split(pre)
        h_prev = o_g * jnp.tanh(i_g * g_g)   # zero cell state => c_t = i*g
        x_t = fc(h_prev)
        preds.append(x_t)
    return jnp.stack(preds, axis=1)


if __name__ == "__main__":
    B, T, I, H = 8, 8, 16, 32     # batch, time_step, input_size, hidden_size
    key = jax.random.PRNGKey(0)
    kx, kp = jax.random.split(key)
    x = jax.random.normal(kx, (B, T, I), jnp.float32)
    params = init_params(kp, I, H)

    out = jax.block_until_ready(lstm_ed_forward(x, params))
    assert out.shape == (B, T, I)

    # Tight check vs matched-precision reference (bf16 dot operands, f32 accumulation):
    # validates the kernel's structure / gate order / decoder folding exactly.
    ref_bf16 = jax.block_until_ready(lstm_ed_reference(x, params, jnp.bfloat16))
    np.testing.assert_allclose(np.asarray(out), np.asarray(ref_bf16), rtol=5e-3, atol=5e-3)

    # Looser check vs the exact f32 module semantics: only difference is bf16
    # quantization of the matmul operands, which compounds slightly over the
    # 2*T-step recurrence.
    ref_f32 = jax.block_until_ready(lstm_ed_reference(x, params, jnp.float32))
    np.testing.assert_allclose(np.asarray(out), np.asarray(ref_f32), rtol=3e-2, atol=3e-2)

    print("KERNEL_OK")
</pallas_src>

<mosaic_0001>
module attributes {stable_mosaic.version = 11 : i64} {
  func.func @_lstm_ed_kernel(%arg0: memref<64x16xf32, #tpu.memory_space<vmem>>, %arg1: memref<16x128xbf16, #tpu.memory_space<vmem>>, %arg2: memref<32x128xbf16, #tpu.memory_space<vmem>>, %arg3: memref<1x128xf32, #tpu.memory_space<vmem>>, %arg4: memref<32x16xbf16, #tpu.memory_space<vmem>>, %arg5: memref<1x16xf32, #tpu.memory_space<vmem>>, %arg6: memref<48x128xbf16, #tpu.memory_space<vmem>>, %arg7: memref<1x128xf32, #tpu.memory_space<vmem>>, %arg8: memref<8x128xf32, #tpu.memory_space<vmem>>) attributes {dimension_semantics = [], scalar_prefetch = 0 : i64, scratch_operands = 0 : i64, tpu.core_type = #tpu.core_type<tc>} {
    %c0 = arith.constant 0 : index
    %c0_0 = arith.constant 0 : index
    %0 = vector.load %arg2[%c0, %c0_0] : memref<32x128xbf16, #tpu.memory_space<vmem>>, vector<32x128xbf16>
    %c0_1 = arith.constant 0 : index
    %c0_2 = arith.constant 0 : index
    %1 = vector.load %arg6[%c0_1, %c0_2] : memref<48x128xbf16, #tpu.memory_space<vmem>>, vector<48x128xbf16>
    %c0_3 = arith.constant 0 : index
    %c0_4 = arith.constant 0 : index
    %2 = vector.load %arg4[%c0_3, %c0_4] : memref<32x16xbf16, #tpu.memory_space<vmem>>, vector<32x16xbf16>
    %c0_5 = arith.constant 0 : index
    %c0_6 = arith.constant 0 : index
    %3 = vector.load %arg5[%c0_5, %c0_6] : memref<1x16xf32, #tpu.memory_space<vmem>>, vector<1x16xf32>
    %4 = vector.shape_cast %3 : vector<1x16xf32> to vector<1x16xf32>
    %5 = vector.broadcast %4 : vector<1x16xf32> to vector<8x16xf32>
    %c0_7 = arith.constant 0 : index
    %c0_8 = arith.constant 0 : index
    %6 = vector.load %arg7[%c0_7, %c0_8] : memref<1x128xf32, #tpu.memory_space<vmem>>, vector<1x128xf32>
    %7 = vector.shape_cast %6 : vector<1x128xf32> to vector<1x128xf32>
    %8 = vector.broadcast %7 : vector<1x128xf32> to vector<8x128xf32>
    %c0_9 = arith.constant 0 : index
    %c0_10 = arith.constant 0 : index
    %9 = vector.load %arg0[%c0_9, %c0_10] : memref<64x16xf32, #tpu.memory_space<vmem>>, vector<64x16xf32>
    %10 = arith.truncf %9 : vector<64x16xf32> to vector<64x16xbf16>
    %c0_11 = arith.constant 0 : index
    %c0_12 = arith.constant 0 : index
    %11 = vector.load %arg1[%c0_11, %c0_12] : memref<16x128xbf16, #tpu.memory_space<vmem>>, vector<16x128xbf16>
    %cst = arith.constant dense<0.000000e+00> : vector<64x128xf32>
    %12 = tpu.matmul %10, %11, %cst {dimension_numbers = #tpu.dot_dimension_numbers<[1], [0], [0], [1], [0, 0, 1, 1], [], []>} : vector<64x16xbf16>, vector<16x128xbf16>, vector<64x128xf32> -> vector<64x128xf32>
    %c0_13 = arith.constant 0 : index
    %c0_14 = arith.constant 0 : index
    %13 = vector.load %arg3[%c0_13, %c0_14] : memref<1x128xf32, #tpu.memory_space<vmem>>, vector<1x128xf32>
    %14 = vector.shape_cast %13 : vector<1x128xf32> to vector<1x128xf32>
    %15 = vector.broadcast %14 : vector<1x128xf32> to vector<64x128xf32>
    %16 = arith.addf %12, %15 : vector<64x128xf32>
    %cst_15 = arith.constant 0.000000e+00 : f32
    %17 = vector.broadcast %cst_15 : f32 to vector<8x32xf32>
    %cst_16 = arith.constant 0.000000e+00 : f32
    %18 = vector.broadcast %cst_16 : f32 to vector<8x32xf32>
    %19 = vector.extract_strided_slice %16 {offsets = [0, 0], sizes = [8, 128], strides = [1, 1]} : vector<64x128xf32> to vector<8x128xf32>
    %20 = arith.truncf %17 : vector<8x32xf32> to vector<8x32xbf16>
    %cst_17 = arith.constant dense<0.000000e+00> : vector<8x128xf32>
    %21 = tpu.matmul %20, %0, %cst_17 {dimension_numbers = #tpu.dot_dimension_numbers<[1], [0], [0], [1], [0, 0, 1, 1], [], []>} : vector<8x32xbf16>, vector<32x128xbf16>, vector<8x128xf32> -> vector<8x128xf32>
    %22 = arith.addf %19, %21 : vector<8x128xf32>
    %23 = arith.negf %22 : vector<8x128xf32>
    %24 = math.exp %23 : vector<8x128xf32>
    %cst_18 = arith.constant 1.000000e+00 : f32
    %25 = vector.broadcast %cst_18 : f32 to vector<8x128xf32>
    %26 = arith.addf %25, %24 : vector<8x128xf32>
    %27 = arith.divf %25, %26 : vector<8x128xf32>
    %28 = math.tanh %22 : vector<8x128xf32>
    %29 = vector.extract_strided_slice %27 {offsets = [0, 0], sizes = [8, 32], strides = [1, 1]} : vector<8x128xf32> to vector<8x32xf32>
    %30 = vector.extract_strided_slice %27 {offsets = [0, 32], sizes = [8, 32], strides = [1, 1]} : vector<8x128xf32> to vector<8x32xf32>
    %31 = vector.extract_strided_slice %28 {offsets = [0, 64], sizes = [8, 32], strides = [1, 1]} : vector<8x128xf32> to vector<8x32xf32>
    %32 = vector.extract_strided_slice %27 {offsets = [0, 96], sizes = [8, 32], strides = [1, 1]} : vector<8x128xf32> to vector<8x32xf32>
    %33 = arith.mulf %30, %18 : vector<8x32xf32>
    %34 = arith.mulf %29, %31 : vector<8x32xf32>
    %35 = arith.addf %33, %34 : vector<8x32xf32>
    %36 = math.tanh %35 : vector<8x32xf32>
    %37 = arith.mulf %32, %36 : vector<8x32xf32>
    %38 = vector.extract_strided_slice %16 {offsets = [8, 0], sizes = [8, 128], strides = [1, 1]} : vector<64x128xf32> to vector<8x128xf32>
    %39 = arith.truncf %37 : vector<8x32xf32> to vector<8x32xbf16>
    %cst_19 = arith.constant dense<0.000000e+00> : vector<8x128xf32>
    %40 = tpu.matmul %39, %0, %cst_19 {dimension_numbers = #tpu.dot_dimension_numbers<[1], [0], [0], [1], [0, 0, 1, 1], [], []>} : vector<8x32xbf16>, vector<32x128xbf16>, vector<8x128xf32> -> vector<8x128xf32>
    %41 = arith.addf %38, %40 : vector<8x128xf32>
    %42 = arith.negf %41 : vector<8x128xf32>
    %43 = math.exp %42 : vector<8x128xf32>
    %cst_20 = arith.constant 1.000000e+00 : f32
    %44 = vector.broadcast %cst_20 : f32 to vector<8x128xf32>
    %45 = arith.addf %44, %43 : vector<8x128xf32>
    %46 = arith.divf %44, %45 : vector<8x128xf32>
    %47 = math.tanh %41 : vector<8x128xf32>
    %48 = vector.extract_strided_slice %46 {offsets = [0, 0], sizes = [8, 32], strides = [1, 1]} : vector<8x128xf32> to vector<8x32xf32>
    %49 = vector.extract_strided_slice %46 {offsets = [0, 32], sizes = [8, 32], strides = [1, 1]} : vector<8x128xf32> to vector<8x32xf32>
    %50 = vector.extract_strided_slice %47 {offsets = [0, 64], sizes = [8, 32], strides = [1, 1]} : vector<8x128xf32> to vector<8x32xf32>
    %51 = vector.extract_strided_slice %46 {offsets = [0, 96], sizes = [8, 32], strides = [1, 1]} : vector<8x128xf32> to vector<8x32xf32>
    %52 = arith.mulf %49, %35 : vector<8x32xf32>
    %53 = arith.mulf %48, %50 : vector<8x32xf32>
    %54 = arith.addf %52, %53 : vector<8x32xf32>
    %55 = math.tanh %54 : vector<8x32xf32>
    %56 = arith.mulf %51, %55 : vector<8x32xf32>
    %57 = vector.extract_strided_slice %16 {offsets = [16, 0], sizes = [8, 128], strides = [1, 1]} : vector<64x128xf32> to vector<8x128xf32>
    %58 = arith.truncf %56 : vector<8x32xf32> to vector<8x32xbf16>
    %cst_21 = arith.constant dense<0.000000e+00> : vector<8x128xf32>
    %59 = tpu.matmul %58, %0, %cst_21 {dimension_numbers = #tpu.dot_dimension_numbers<[1], [0], [0], [1], [0, 0, 1, 1], [], []>} : vector<8x32xbf16>, vector<32x128xbf16>, vector<8x128xf32> -> vector<8x128xf32>
    %60 = arith.addf %57, %59 : vector<8x128xf32>
    %61 = arith.negf %60 : vector<8x128xf32>
    %62 = math.exp %61 : vector<8x128xf32>
    %cst_22 = arith.constant 1.000000e+00 : f32
    %63 = vector.broadcast %cst_22 : f32 to vector<8x128xf32>
    %64 = arith.addf %63, %62 : vector<8x128xf32>
    %65 = arith.divf %63, %64 : vector<8x128xf32>
    %66 = math.tanh %60 : vector<8x128xf32>
    %67 = vector.extract_strided_slice %65 {offsets = [0, 0], sizes = [8, 32], strides = [1, 1]} : vector<8x128xf32> to vector<8x32xf32>
    %68 = vector.extract_strided_slice %65 {offsets = [0, 32], sizes = [8, 32], strides = [1, 1]} : vector<8x128xf32> to vector<8x32xf32>
    %69 = vector.extract_strided_slice %66 {offsets = [0, 64], sizes = [8, 32], strides = [1, 1]} : vector<8x128xf32> to vector<8x32xf32>
    %70 = vector.extract_strided_slice %65 {offsets = [0, 96], sizes = [8, 32], strides = [1, 1]} : vector<8x128xf32> to vector<8x32xf32>
    %71 = arith.mulf %68, %54 : vector<8x32xf32>
    %72 = arith.mulf %67, %69 : vector<8x32xf32>
    %73 = arith.addf %71, %72 : vector<8x32xf32>
    %74 = math.tanh %73 : vector<8x32xf32>
    %75 = arith.mulf %70, %74 : vector<8x32xf32>
    %76 = vector.extract_strided_slice %16 {offsets = [24, 0], sizes = [8, 128], strides = [1, 1]} : vector<64x128xf32> to vector<8x128xf32>
    %77 = arith.truncf %75 : vector<8x32xf32> to vector<8x32xbf16>
    %cst_23 = arith.constant dense<0.000000e+00> : vector<8x128xf32>
    %78 = tpu.matmul %77, %0, %cst_23 {dimension_numbers = #tpu.dot_dimension_numbers<[1], [0], [0], [1], [0, 0, 1, 1], [], []>} : vector<8x32xbf16>, vector<32x128xbf16>, vector<8x128xf32> -> vector<8x128xf32>
    %79 = arith.addf %76, %78 : vector<8x128xf32>
    %80 = arith.negf %79 : vector<8x128xf32>
    %81 = math.exp %80 : vector<8x128xf32>
    %cst_24 = arith.constant 1.000000e+00 : f32
    %82 = vector.broadcast %cst_24 : f32 to vector<8x128xf32>
    %83 = arith.addf %82, %81 : vector<8x128xf32>
    %84 = arith.divf %82, %83 : vector<8x128xf32>
    %85 = math.tanh %79 : vector<8x128xf32>
    %86 = vector.extract_strided_slice %84 {offsets = [0, 0], sizes = [8, 32], strides = [1, 1]} : vector<8x128xf32> to vector<8x32xf32>
    %87 = vector.extract_strided_slice %84 {offsets = [0, 32], sizes = [8, 32], strides = [1, 1]} : vector<8x128xf32> to vector<8x32xf32>
    %88 = vector.extract_strided_slice %85 {offsets = [0, 64], sizes = [8, 32], strides = [1, 1]} : vector<8x128xf32> to vector<8x32xf32>
    %89 = vector.extract_strided_slice %84 {offsets = [0, 96], sizes = [8, 32], strides = [1, 1]} : vector<8x128xf32> to vector<8x32xf32>
    %90 = arith.mulf %87, %73 : vector<8x32xf32>
    %91 = arith.mulf %86, %88 : vector<8x32xf32>
    %92 = arith.addf %90, %91 : vector<8x32xf32>
    %93 = math.tanh %92 : vector<8x32xf32>
    %94 = arith.mulf %89, %93 : vector<8x32xf32>
    %95 = vector.extract_strided_slice %16 {offsets = [32, 0], sizes = [8, 128], strides = [1, 1]} : vector<64x128xf32> to vector<8x128xf32>
    %96 = arith.truncf %94 : vector<8x32xf32> to vector<8x32xbf16>
    %cst_25 = arith.constant dense<0.000000e+00> : vector<8x128xf32>
    %97 = tpu.matmul %96, %0, %cst_25 {dimension_numbers = #tpu.dot_dimension_numbers<[1], [0], [0], [1], [0, 0, 1, 1], [], []>} : vector<8x32xbf16>, vector<32x128xbf16>, vector<8x128xf32> -> vector<8x128xf32>
    %98 = arith.addf %95, %97 : vector<8x128xf32>
    %99 = arith.negf %98 : vector<8x128xf32>
    %100 = math.exp %99 : vector<8x128xf32>
    %cst_26 = arith.constant 1.000000e+00 : f32
    %101 = vector.broadcast %cst_26 : f32 to vector<8x128xf32>
    %102 = arith.addf %101, %100 : vector<8x128xf32>
    %103 = arith.divf %101, %102 : vector<8x128xf32>
    %104 = math.tanh %98 : vector<8x128xf32>
    %105 = vector.extract_strided_slice %103 {offsets = [0, 0], sizes = [8, 32], strides = [1, 1]} : vector<8x128xf32> to vector<8x32xf32>
    %106 = vector.extract_strided_slice %103 {offsets = [0, 32], sizes = [8, 32], strides = [1, 1]} : vector<8x128xf32> to vector<8x32xf32>
    %107 = vector.extract_strided_slice %104 {offsets = [0, 64], sizes = [8, 32], strides = [1, 1]} : vector<8x128xf32> to vector<8x32xf32>
    %108 = vector.extract_strided_slice %103 {offsets = [0, 96], sizes = [8, 32], strides = [1, 1]} : vector<8x128xf32> to vector<8x32xf32>
    %109 = arith.mulf %106, %92 : vector<8x32xf32>
    %110 = arith.mulf %105, %107 : vector<8x32xf32>
    %111 = arith.addf %109, %110 : vector<8x32xf32>
    %112 = math.tanh %111 : vector<8x32xf32>
    %113 = arith.mulf %108, %112 : vector<8x32xf32>
    %114 = vector.extract_strided_slice %16 {offsets = [40, 0], sizes = [8, 128], strides = [1, 1]} : vector<64x128xf32> to vector<8x128xf32>
    %115 = arith.truncf %113 : vector<8x32xf32> to vector<8x32xbf16>
    %cst_27 = arith.constant dense<0.000000e+00> : vector<8x128xf32>
    %116 = tpu.matmul %115, %0, %cst_27 {dimension_numbers = #tpu.dot_dimension_numbers<[1], [0], [0], [1], [0, 0, 1, 1], [], []>} : vector<8x32xbf16>, vector<32x128xbf16>, vector<8x128xf32> -> vector<8x128xf32>
    %117 = arith.addf %114, %116 : vector<8x128xf32>
    %118 = arith.negf %117 : vector<8x128xf32>
    %119 = math.exp %118 : vector<8x128xf32>
    %cst_28 = arith.constant 1.000000e+00 : f32
    %120 = vector.broadcast %cst_28 : f32 to vector<8x128xf32>
    %121 = arith.addf %120, %119 : vector<8x128xf32>
    %122 = arith.divf %120, %121 : vector<8x128xf32>
    %123 = math.tanh %117 : vector<8x128xf32>
    %124 = vector.extract_strided_slice %122 {offsets = [0, 0], sizes = [8, 32], strides = [1, 1]} : vector<8x128xf32> to vector<8x32xf32>
    %125 = vector.extract_strided_slice %122 {offsets = [0, 32], sizes = [8, 32], strides = [1, 1]} : vector<8x128xf32> to vector<8x32xf32>
    %126 = vector.extract_strided_slice %123 {offsets = [0, 64], sizes = [8, 32], strides = [1, 1]} : vector<8x128xf32> to vector<8x32xf32>
    %127 = vector.extract_strided_slice %122 {offsets = [0, 96], sizes = [8, 32], strides = [1, 1]} : vector<8x128xf32> to vector<8x32xf32>
    %128 = arith.mulf %125, %111 : vector<8x32xf32>
    %129 = arith.mulf %124, %126 : vector<8x32xf32>
    %130 = arith.addf %128, %129 : vector<8x32xf32>
    %131 = math.tanh %130 : vector<8x32xf32>
    %132 = arith.mulf %127, %131 : vector<8x32xf32>
    %133 = vector.extract_strided_slice %16 {offsets = [48, 0], sizes = [8, 128], strides = [1, 1]} : vector<64x128xf32> to vector<8x128xf32>
    %134 = arith.truncf %132 : vector<8x32xf32> to vector<8x32xbf16>
    %cst_29 = arith.constant dense<0.000000e+00> : vector<8x128xf32>
    %135 = tpu.matmul %134, %0, %cst_29 {dimension_numbers = #tpu.dot_dimension_numbers<[1], [0], [0], [1], [0, 0, 1, 1], [], []>} : vector<8x32xbf16>, vector<32x128xbf16>, vector<8x128xf32> -> vector<8x128xf32>
    %136 = arith.addf %133, %135 : vector<8x128xf32>
    %137 = arith.negf %136 : vector<8x128xf32>
    %138 = math.exp %137 : vector<8x128xf32>
    %cst_30 = arith.constant 1.000000e+00 : f32
    %139 = vector.broadcast %cst_30 : f32 to vector<8x128xf32>
    %140 = arith.addf %139, %138 : vector<8x128xf32>
    %141 = arith.divf %139, %140 : vector<8x128xf32>
    %142 = math.tanh %136 : vector<8x128xf32>
    %143 = vector.extract_strided_slice %141 {offsets = [0, 0], sizes = [8, 32], strides = [1, 1]} : vector<8x128xf32> to vector<8x32xf32>
    %144 = vector.extract_strided_slice %141 {offsets = [0, 32], sizes = [8, 32], strides = [1, 1]} : vector<8x128xf32> to vector<8x32xf32>
    %145 = vector.extract_strided_slice %142 {offsets = [0, 64], sizes = [8, 32], strides = [1, 1]} : vector<8x128xf32> to vector<8x32xf32>
    %146 = vector.extract_strided_slice %141 {offsets = [0, 96], sizes = [8, 32], strides = [1, 1]} : vector<8x128xf32> to vector<8x32xf32>
    %147 = arith.mulf %144, %130 : vector<8x32xf32>
    %148 = arith.mulf %143, %145 : vector<8x32xf32>
    %149 = arith.addf %147, %148 : vector<8x32xf32>
    %150 = math.tanh %149 : vector<8x32xf32>
    %151 = arith.mulf %146, %150 : vector<8x32xf32>
    %152 = vector.extract_strided_slice %16 {offsets = [56, 0], sizes = [8, 128], strides = [1, 1]} : vector<64x128xf32> to vector<8x128xf32>
    %153 = arith.truncf %151 : vector<8x32xf32> to vector<8x32xbf16>
    %cst_31 = arith.constant dense<0.000000e+00> : vector<8x128xf32>
    %154 = tpu.matmul %153, %0, %cst_31 {dimension_numbers = #tpu.dot_dimension_numbers<[1], [0], [0], [1], [0, 0, 1, 1], [], []>} : vector<8x32xbf16>, vector<32x128xbf16>, vector<8x128xf32> -> vector<8x128xf32>
    %155 = arith.addf %152, %154 : vector<8x128xf32>
    %156 = arith.negf %155 : vector<8x128xf32>
    %157 = math.exp %156 : vector<8x128xf32>
    %cst_32 = arith.constant 1.000000e+00 : f32
    %158 = vector.broadcast %cst_32 : f32 to vector<8x128xf32>
    %159 = arith.addf %158, %157 : vector<8x128xf32>
    %160 = arith.divf %158, %159 : vector<8x128xf32>
    %161 = math.tanh %155 : vector<8x128xf32>
    %162 = vector.extract_strided_slice %160 {offsets = [0, 0], sizes = [8, 32], strides = [1, 1]} : vector<8x128xf32> to vector<8x32xf32>
    %163 = vector.extract_strided_slice %160 {offsets = [0, 32], sizes = [8, 32], strides = [1, 1]} : vector<8x128xf32> to vector<8x32xf32>
    %164 = vector.extract_strided_slice %161 {offsets = [0, 64], sizes = [8, 32], strides = [1, 1]} : vector<8x128xf32> to vector<8x32xf32>
    %165 = vector.extract_strided_slice %160 {offsets = [0, 96], sizes = [8, 32], strides = [1, 1]} : vector<8x128xf32> to vector<8x32xf32>
    %166 = arith.mulf %163, %149 : vector<8x32xf32>
    %167 = arith.mulf %162, %164 : vector<8x32xf32>
    %168 = arith.addf %166, %167 : vector<8x32xf32>
    %169 = math.tanh %168 : vector<8x32xf32>
    %170 = arith.mulf %165, %169 : vector<8x32xf32>
    %171 = arith.truncf %170 : vector<8x32xf32> to vector<8x32xbf16>
    %cst_33 = arith.constant dense<0.000000e+00> : vector<8x16xf32>
    %172 = tpu.matmul %171, %2, %cst_33 {dimension_numbers = #tpu.dot_dimension_numbers<[1], [0], [0], [1], [0, 0, 1, 1], [], []>} : vector<8x32xbf16>, vector<32x16xbf16>, vector<8x16xf32> -> vector<8x16xf32>
    %173 = arith.addf %172, %5 : vector<8x16xf32>
    %cst_34 = arith.constant 0.000000e+00 : f32
    %174 = vector.broadcast %cst_34 : f32 to vector<8x16xf32>
    %175 = arith.maximumf %173, %174 : vector<8x16xf32>
    %176 = arith.truncf %170 : vector<8x32xf32> to vector<8x32xbf16>
    %177 = arith.truncf %175 : vector<8x16xf32> to vector<8x16xbf16>
    %178 = tpu.concatenate %176, %177 in 1 : vector<8x32xbf16>, vector<8x16xbf16> -> vector<8x48xbf16>
    %cst_35 = arith.constant dense<0.000000e+00> : vector<8x128xf32>
    %179 = tpu.matmul %178, %1, %cst_35 {dimension_numbers = #tpu.dot_dimension_numbers<[1], [0], [0], [1], [0, 0, 1, 1], [], []>} : vector<8x48xbf16>, vector<48x128xbf16>, vector<8x128xf32> -> vector<8x128xf32>
    %180 = arith.addf %179, %8 : vector<8x128xf32>
    %181 = arith.negf %180 : vector<8x128xf32>
    %182 = math.exp %181 : vector<8x128xf32>
    %cst_36 = arith.constant 1.000000e+00 : f32
    %183 = vector.broadcast %cst_36 : f32 to vector<8x128xf32>
    %184 = arith.addf %183, %182 : vector<8x128xf32>
    %185 = arith.divf %183, %184 : vector<8x128xf32>
    %186 = math.tanh %180 : vector<8x128xf32>
    %187 = vector.extract_strided_slice %185 {offsets = [0, 0], sizes = [8, 32], strides = [1, 1]} : vector<8x128xf32> to vector<8x32xf32>
    %188 = vector.extract_strided_slice %186 {offsets = [0, 64], sizes = [8, 32], strides = [1, 1]} : vector<8x128xf32> to vector<8x32xf32>
    %189 = vector.extract_strided_slice %185 {offsets = [0, 96], sizes = [8, 32], strides = [1, 1]} : vector<8x128xf32> to vector<8x32xf32>
    %190 = arith.mulf %187, %188 : vector<8x32xf32>
    %191 = math.tanh %190 : vector<8x32xf32>
    %192 = arith.mulf %189, %191 : vector<8x32xf32>
    %193 = arith.truncf %192 : vector<8x32xf32> to vector<8x32xbf16>
    %cst_37 = arith.constant dense<0.000000e+00> : vector<8x16xf32>
    %194 = tpu.matmul %193, %2, %cst_37 {dimension_numbers = #tpu.dot_dimension_numbers<[1], [0], [0], [1], [0, 0, 1, 1], [], []>} : vector<8x32xbf16>, vector<32x16xbf16>, vector<8x16xf32> -> vector<8x16xf32>
    %195 = arith.addf %194, %5 : vector<8x16xf32>
    %cst_38 = arith.constant 0.000000e+00 : f32
    %196 = vector.broadcast %cst_38 : f32 to vector<8x16xf32>
    %197 = arith.maximumf %195, %196 : vector<8x16xf32>
    %198 = arith.truncf %197 : vector<8x16xf32> to vector<8x16xbf16>
    %199 = tpu.concatenate %193, %198 in 1 : vector<8x32xbf16>, vector<8x16xbf16> -> vector<8x48xbf16>
    %cst_39 = arith.constant dense<0.000000e+00> : vector<8x128xf32>
    %200 = tpu.matmul %199, %1, %cst_39 {dimension_numbers = #tpu.dot_dimension_numbers<[1], [0], [0], [1], [0, 0, 1, 1], [], []>} : vector<8x48xbf16>, vector<48x128xbf16>, vector<8x128xf32> -> vector<8x128xf32>
    %201 = arith.addf %200, %8 : vector<8x128xf32>
    %202 = arith.negf %201 : vector<8x128xf32>
    %203 = math.exp %202 : vector<8x128xf32>
    %cst_40 = arith.constant 1.000000e+00 : f32
    %204 = vector.broadcast %cst_40 : f32 to vector<8x128xf32>
    %205 = arith.addf %204, %203 : vector<8x128xf32>
    %206 = arith.divf %204, %205 : vector<8x128xf32>
    %207 = math.tanh %201 : vector<8x128xf32>
    %208 = vector.extract_strided_slice %206 {offsets = [0, 0], sizes = [8, 32], strides = [1, 1]} : vector<8x128xf32> to vector<8x32xf32>
    %209 = vector.extract_strided_slice %207 {offsets = [0, 64], sizes = [8, 32], strides = [1, 1]} : vector<8x128xf32> to vector<8x32xf32>
    %210 = vector.extract_strided_slice %206 {offsets = [0, 96], sizes = [8, 32], strides = [1, 1]} : vector<8x128xf32> to vector<8x32xf32>
    %211 = arith.mulf %208, %209 : vector<8x32xf32>
    %212 = math.tanh %211 : vector<8x32xf32>
    %213 = arith.mulf %210, %212 : vector<8x32xf32>
    %214 = arith.truncf %213 : vector<8x32xf32> to vector<8x32xbf16>
    %cst_41 = arith.constant dense<0.000000e+00> : vector<8x16xf32>
    %215 = tpu.matmul %214, %2, %cst_41 {dimension_numbers = #tpu.dot_dimension_numbers<[1], [0], [0], [1], [0, 0, 1, 1], [], []>} : vector<8x32xbf16>, vector<32x16xbf16>, vector<8x16xf32> -> vector<8x16xf32>
    %216 = arith.addf %215, %5 : vector<8x16xf32>
    %cst_42 = arith.constant 0.000000e+00 : f32
    %217 = vector.broadcast %cst_42 : f32 to vector<8x16xf32>
    %218 = arith.maximumf %216, %217 : vector<8x16xf32>
    %219 = arith.truncf %218 : vector<8x16xf32> to vector<8x16xbf16>
    %220 = tpu.concatenate %214, %219 in 1 : vector<8x32xbf16>, vector<8x16xbf16> -> vector<8x48xbf16>
    %cst_43 = arith.constant dense<0.000000e+00> : vector<8x128xf32>
    %221 = tpu.matmul %220, %1, %cst_43 {dimension_numbers = #tpu.dot_dimension_numbers<[1], [0], [0], [1], [0, 0, 1, 1], [], []>} : vector<8x48xbf16>, vector<48x128xbf16>, vector<8x128xf32> -> vector<8x128xf32>
    %222 = arith.addf %221, %8 : vector<8x128xf32>
    %223 = arith.negf %222 : vector<8x128xf32>
    %224 = math.exp %223 : vector<8x128xf32>
    %cst_44 = arith.constant 1.000000e+00 : f32
    %225 = vector.broadcast %cst_44 : f32 to vector<8x128xf32>
    %226 = arith.addf %225, %224 : vector<8x128xf32>
    %227 = arith.divf %225, %226 : vector<8x128xf32>
    %228 = math.tanh %222 : vector<8x128xf32>
    %229 = vector.extract_strided_slice %227 {offsets = [0, 0], sizes = [8, 32], strides = [1, 1]} : vector<8x128xf32> to vector<8x32xf32>
    %230 = vector.extract_strided_slice %228 {offsets = [0, 64], sizes = [8, 32], strides = [1, 1]} : vector<8x128xf32> to vector<8x32xf32>
    %231 = vector.extract_strided_slice %227 {offsets = [0, 96], sizes = [8, 32], strides = [1, 1]} : vector<8x128xf32> to vector<8x32xf32>
    %232 = arith.mulf %229, %230 : vector<8x32xf32>
    %233 = math.tanh %232 : vector<8x32xf32>
    %234 = arith.mulf %231, %233 : vector<8x32xf32>
    %235 = arith.truncf %234 : vector<8x32xf32> to vector<8x32xbf16>
    %cst_45 = arith.constant dense<0.000000e+00> : vector<8x16xf32>
    %236 = tpu.matmul %235, %2, %cst_45 {dimension_numbers = #tpu.dot_dimension_numbers<[1], [0], [0], [1], [0, 0, 1, 1], [], []>} : vector<8x32xbf16>, vector<32x16xbf16>, vector<8x16xf32> -> vector<8x16xf32>
    %237 = arith.addf %236, %5 : vector<8x16xf32>
    %cst_46 = arith.constant 0.000000e+00 : f32
    %238 = vector.broadcast %cst_46 : f32 to vector<8x16xf32>
    %239 = arith.maximumf %237, %238 : vector<8x16xf32>
    %240 = arith.truncf %239 : vector<8x16xf32> to vector<8x16xbf16>
    %241 = tpu.concatenate %235, %240 in 1 : vector<8x32xbf16>, vector<8x16xbf16> -> vector<8x48xbf16>
    %cst_47 = arith.constant dense<0.000000e+00> : vector<8x128xf32>
    %242 = tpu.matmul %241, %1, %cst_47 {dimension_numbers = #tpu.dot_dimension_numbers<[1], [0], [0], [1], [0, 0, 1, 1], [], []>} : vector<8x48xbf16>, vector<48x128xbf16>, vector<8x128xf32> -> vector<8x128xf32>
    %243 = arith.addf %242, %8 : vector<8x128xf32>
    %244 = arith.negf %243 : vector<8x128xf32>
    %245 = math.exp %244 : vector<8x128xf32>
    %cst_48 = arith.constant 1.000000e+00 : f32
    %246 = vector.broadcast %cst_48 : f32 to vector<8x128xf32>
    %247 = arith.addf %246, %245 : vector<8x128xf32>
    %248 = arith.divf %246, %247 : vector<8x128xf32>
    %249 = math.tanh %243 : vector<8x128xf32>
    %250 = vector.extract_strided_slice %248 {offsets = [0, 0], sizes = [8, 32], strides = [1, 1]} : vector<8x128xf32> to vector<8x32xf32>
    %251 = vector.extract_strided_slice %249 {offsets = [0, 64], sizes = [8, 32], strides = [1, 1]} : vector<8x128xf32> to vector<8x32xf32>
    %252 = vector.extract_strided_slice %248 {offsets = [0, 96], sizes = [8, 32], strides = [1, 1]} : vector<8x128xf32> to vector<8x32xf32>
    %253 = arith.mulf %250, %251 : vector<8x32xf32>
    %254 = math.tanh %253 : vector<8x32xf32>
    %255 = arith.mulf %252, %254 : vector<8x32xf32>
    %256 = arith.truncf %255 : vector<8x32xf32> to vector<8x32xbf16>
    %cst_49 = arith.constant dense<0.000000e+00> : vector<8x16xf32>
    %257 = tpu.matmul %256, %2, %cst_49 {dimension_numbers = #tpu.dot_dimension_numbers<[1], [0], [0], [1], [0, 0, 1, 1], [], []>} : vector<8x32xbf16>, vector<32x16xbf16>, vector<8x16xf32> -> vector<8x16xf32>
    %258 = arith.addf %257, %5 : vector<8x16xf32>
    %cst_50 = arith.constant 0.000000e+00 : f32
    %259 = vector.broadcast %cst_50 : f32 to vector<8x16xf32>
    %260 = arith.maximumf %258, %259 : vector<8x16xf32>
    %261 = arith.truncf %260 : vector<8x16xf32> to vector<8x16xbf16>
    %262 = tpu.concatenate %256, %261 in 1 : vector<8x32xbf16>, vector<8x16xbf16> -> vector<8x48xbf16>
    %cst_51 = arith.constant dense<0.000000e+00> : vector<8x128xf32>
    %263 = tpu.matmul %262, %1, %cst_51 {dimension_numbers = #tpu.dot_dimension_numbers<[1], [0], [0], [1], [0, 0, 1, 1], [], []>} : vector<8x48xbf16>, vector<48x128xbf16>, vector<8x128xf32> -> vector<8x128xf32>
    %264 = arith.addf %263, %8 : vector<8x128xf32>
    %265 = arith.negf %264 : vector<8x128xf32>
    %266 = math.exp %265 : vector<8x128xf32>
    %cst_52 = arith.constant 1.000000e+00 : f32
    %267 = vector.broadcast %cst_52 : f32 to vector<8x128xf32>
    %268 = arith.addf %267, %266 : vector<8x128xf32>
    %269 = arith.divf %267, %268 : vector<8x128xf32>
    %270 = math.tanh %264 : vector<8x128xf32>
    %271 = vector.extract_strided_slice %269 {offsets = [0, 0], sizes = [8, 32], strides = [1, 1]} : vector<8x128xf32> to vector<8x32xf32>
    %272 = vector.extract_strided_slice %270 {offsets = [0, 64], sizes = [8, 32], strides = [1, 1]} : vector<8x128xf32> to vector<8x32xf32>
    %273 = vector.extract_strided_slice %269 {offsets = [0, 96], sizes = [8, 32], strides = [1, 1]} : vector<8x128xf32> to vector<8x32xf32>
    %274 = arith.mulf %271, %272 : vector<8x32xf32>
    %275 = math.tanh %274 : vector<8x32xf32>
    %276 = arith.mulf %273, %275 : vector<8x32xf32>
    %277 = arith.truncf %276 : vector<8x32xf32> to vector<8x32xbf16>
    %cst_53 = arith.constant dense<0.000000e+00> : vector<8x16xf32>
    %278 = tpu.matmul %277, %2, %cst_53 {dimension_numbers = #tpu.dot_dimension_numbers<[1], [0], [0], [1], [0, 0, 1, 1], [], []>} : vector<8x32xbf16>, vector<32x16xbf16>, vector<8x16xf32> -> vector<8x16xf32>
    %279 = arith.addf %278, %5 : vector<8x16xf32>
    %cst_54 = arith.constant 0.000000e+00 : f32
    %280 = vector.broadcast %cst_54 : f32 to vector<8x16xf32>
    %281 = arith.maximumf %279, %280 : vector<8x16xf32>
    %282 = arith.truncf %281 : vector<8x16xf32> to vector<8x16xbf16>
    %283 = tpu.concatenate %277, %282 in 1 : vector<8x32xbf16>, vector<8x16xbf16> -> vector<8x48xbf16>
    %cst_55 = arith.constant dense<0.000000e+00> : vector<8x128xf32>
    %284 = tpu.matmul %283, %1, %cst_55 {dimension_numbers = #tpu.dot_dimension_numbers<[1], [0], [0], [1], [0, 0, 1, 1], [], []>} : vector<8x48xbf16>, vector<48x128xbf16>, vector<8x128xf32> -> vector<8x128xf32>
    %285 = arith.addf %284, %8 : vector<8x128xf32>
    %286 = arith.negf %285 : vector<8x128xf32>
    %287 = math.exp %286 : vector<8x128xf32>
    %cst_56 = arith.constant 1.000000e+00 : f32
    %288 = vector.broadcast %cst_56 : f32 to vector<8x128xf32>
    %289 = arith.addf %288, %287 : vector<8x128xf32>
    %290 = arith.divf %288, %289 : vector<8x128xf32>
    %291 = math.tanh %285 : vector<8x128xf32>
    %292 = vector.extract_strided_slice %290 {offsets = [0, 0], sizes = [8, 32], strides = [1, 1]} : vector<8x128xf32> to vector<8x32xf32>
    %293 = vector.extract_strided_slice %291 {offsets = [0, 64], sizes = [8, 32], strides = [1, 1]} : vector<8x128xf32> to vector<8x32xf32>
    %294 = vector.extract_strided_slice %290 {offsets = [0, 96], sizes = [8, 32], strides = [1, 1]} : vector<8x128xf32> to vector<8x32xf32>
    %295 = arith.mulf %292, %293 : vector<8x32xf32>
    %296 = math.tanh %295 : vector<8x32xf32>
    %297 = arith.mulf %294, %296 : vector<8x32xf32>
    %298 = arith.truncf %297 : vector<8x32xf32> to vector<8x32xbf16>
    %cst_57 = arith.constant dense<0.000000e+00> : vector<8x16xf32>
    %299 = tpu.matmul %298, %2, %cst_57 {dimension_numbers = #tpu.dot_dimension_numbers<[1], [0], [0], [1], [0, 0, 1, 1], [], []>} : vector<8x32xbf16>, vector<32x16xbf16>, vector<8x16xf32> -> vector<8x16xf32>
    %300 = arith.addf %299, %5 : vector<8x16xf32>
    %cst_58 = arith.constant 0.000000e+00 : f32
    %301 = vector.broadcast %cst_58 : f32 to vector<8x16xf32>
    %302 = arith.maximumf %300, %301 : vector<8x16xf32>
    %303 = arith.truncf %302 : vector<8x16xf32> to vector<8x16xbf16>
    %304 = tpu.concatenate %298, %303 in 1 : vector<8x32xbf16>, vector<8x16xbf16> -> vector<8x48xbf16>
    %cst_59 = arith.constant dense<0.000000e+00> : vector<8x128xf32>
    %305 = tpu.matmul %304, %1, %cst_59 {dimension_numbers = #tpu.dot_dimension_numbers<[1], [0], [0], [1], [0, 0, 1, 1], [], []>} : vector<8x48xbf16>, vector<48x128xbf16>, vector<8x128xf32> -> vector<8x128xf32>
    %306 = arith.addf %305, %8 : vector<8x128xf32>
    %307 = arith.negf %306 : vector<8x128xf32>
    %308 = math.exp %307 : vector<8x128xf32>
    %cst_60 = arith.constant 1.000000e+00 : f32
    %309 = vector.broadcast %cst_60 : f32 to vector<8x128xf32>
    %310 = arith.addf %309, %308 : vector<8x128xf32>
    %311 = arith.divf %309, %310 : vector<8x128xf32>
    %312 = math.tanh %306 : vector<8x128xf32>
    %313 = vector.extract_strided_slice %311 {offsets = [0, 0], sizes = [8, 32], strides = [1, 1]} : vector<8x128xf32> to vector<8x32xf32>
    %314 = vector.extract_strided_slice %312 {offsets = [0, 64], sizes = [8, 32], strides = [1, 1]} : vector<8x128xf32> to vector<8x32xf32>
    %315 = vector.extract_strided_slice %311 {offsets = [0, 96], sizes = [8, 32], strides = [1, 1]} : vector<8x128xf32> to vector<8x32xf32>
    %316 = arith.mulf %313, %314 : vector<8x32xf32>
    %317 = math.tanh %316 : vector<8x32xf32>
    %318 = arith.mulf %315, %317 : vector<8x32xf32>
    %319 = arith.truncf %318 : vector<8x32xf32> to vector<8x32xbf16>
    %cst_61 = arith.constant dense<0.000000e+00> : vector<8x16xf32>
    %320 = tpu.matmul %319, %2, %cst_61 {dimension_numbers = #tpu.dot_dimension_numbers<[1], [0], [0], [1], [0, 0, 1, 1], [], []>} : vector<8x32xbf16>, vector<32x16xbf16>, vector<8x16xf32> -> vector<8x16xf32>
    %321 = arith.addf %320, %5 : vector<8x16xf32>
    %cst_62 = arith.constant 0.000000e+00 : f32
    %322 = vector.broadcast %cst_62 : f32 to vector<8x16xf32>
    %323 = arith.maximumf %321, %322 : vector<8x16xf32>
    %324 = tpu.concatenate %175, %197, %218, %239, %260, %281, %302, %323 in 1 : vector<8x16xf32>, vector<8x16xf32>, vector<8x16xf32>, vector<8x16xf32>, vector<8x16xf32>, vector<8x16xf32>, vector<8x16xf32>, vector<8x16xf32> -> vector<8x128xf32>
    %c0_63 = arith.constant 0 : index
    %c0_64 = arith.constant 0 : index
    %325 = vector.load %arg8[%c0_63, %c0_64] : memref<8x128xf32, #tpu.memory_space<vmem>>, vector<8x128xf32>
    tpu.vector_store %arg8[%c0_63, %c0_64], %324 {strides = array<i32>} : memref<8x128xf32, #tpu.memory_space<vmem>>, vector<8x128xf32>,
    return
  }
}

</mosaic_0001>

<llo_original>
// kernel: tpu_custom_call.1
$region0: #{tpu_custom_call.1}
  #allocation0 [shape = 'u32[]', space=smem, size = 0x4, offset = 0x4, fixed_abs, tag = 'smem constant byte address 0x4 - core index']
  #allocation1 [shape = 'u32[72,128]{1,0:T(1,128)}', space=vmem, size = 0x9000, scoped, tag = 'internal scratch']
  %s0 = inlined_call_operand.vmem [shape: f32[64,16], index: 0, kind: input, shape index: {}]
  %s1 = inlined_call_operand.vmem [shape: bf16[16,128], index: 1, kind: input, shape index: {}]
  %s2 = inlined_call_operand.vmem [shape: bf16[32,128], index: 2, kind: input, shape index: {}]
  %s3 = inlined_call_operand.vmem [shape: f32[1,128], index: 3, kind: input, shape index: {}]
  %s4 = inlined_call_operand.vmem [shape: bf16[32,16], index: 4, kind: input, shape index: {}]
  %s5 = inlined_call_operand.vmem [shape: f32[1,16], index: 5, kind: input, shape index: {}]
  %s6 = inlined_call_operand.vmem [shape: bf16[48,128], index: 6, kind: input, shape index: {}]
  %s7 = inlined_call_operand.vmem [shape: f32[1,128], index: 7, kind: input, shape index: {}]
  %s8 = inlined_call_operand.hbm [shape: f32[8,128], index: 8, kind: output, shape index: {}]
  %s9 = sld [smem:[#allocation0]]
  $region42: #{tpu_custom_call.1} parent=0
    _
  %s11 = ssub.s32 1, %s9
  %s12 = scalar_select 0, %s11, %s9
  $region1: #{tpu_custom_call.1} parent=0
    #allocation2 [shape = 'u8[4096]{0}', space=vmem, size = 0x1000, scoped, tag = 'output window, operand 0, single buffered']
    #allocation3 [shape = 's32[1]{0}', space=sflag, size = 0x4, scoped, tag = 'scoped memory for tpu_custom_call.1']
    %13 = vsyncpa [#allocation3], 0
    // Predicated region
    $region2: #{tpu_custom_call.1} parent=1 // pred_check
      _
    $region3: #{tpu_custom_call.1} parent=1 // pred_check_branch
      %15 = sbr.rel (0) target = $region5
    $region4: #{tpu_custom_call.1} parent=1 // pred_region
      _
    $region5: #{tpu_custom_call.1} parent=1 // pred_fallthru
      _
    // Predicated region
    $region6: #{tpu_custom_call.1} parent=1 // pred_check
      _
    $region7: #{tpu_custom_call.1} parent=1 // pred_check_branch
      %17 = sbr.rel (0) target = $region9
    $region8: #{tpu_custom_call.1} parent=1 // pred_region
      _
    $region9: #{tpu_custom_call.1} parent=1 // pred_fallthru
      _
    // Predicated region
    $region10: #{tpu_custom_call.1} parent=1 // pred_check
      _
    $region11: #{tpu_custom_call.1} parent=1 // pred_check_branch
      %19 = sbr.rel (0) target = $region13
    $region12: #{tpu_custom_call.1} parent=1 // pred_region
      _
    $region13: #{tpu_custom_call.1} parent=1 // pred_fallthru
      _
    // Predicated region
    $region14: #{tpu_custom_call.1} parent=1 // pred_check
      _
    $region15: #{tpu_custom_call.1} parent=1 // pred_check_branch
      %21 = sbr.rel (0) target = $region17
    $region16: #{tpu_custom_call.1} parent=1 // pred_region
      _
    $region17: #{tpu_custom_call.1} parent=1 // pred_fallthru
      _
    // Predicated region
    $region18: #{tpu_custom_call.1} parent=1 // pred_check
      _
    $region19: #{tpu_custom_call.1} parent=1 // pred_check_branch
      %23 = sbr.rel (0) target = $region21
    $region20: #{tpu_custom_call.1} parent=1 // pred_region
      _
    $region21: #{tpu_custom_call.1} parent=1 // pred_fallthru
      _
    // Predicated region
    $region22: #{tpu_custom_call.1} parent=1 // pred_check
      _
    $region23: #{tpu_custom_call.1} parent=1 // pred_check_branch
      %25 = sbr.rel (0) target = $region25
    $region24: #{tpu_custom_call.1} parent=1 // pred_region
      _
    $region25: #{tpu_custom_call.1} parent=1 // pred_fallthru
      _
    // Predicated region
    $region26: #{tpu_custom_call.1} parent=1 // pred_check
      _
    $region27: #{tpu_custom_call.1} parent=1 // pred_check_branch
      %27 = sbr.rel (0) target = $region29
    $region28: #{tpu_custom_call.1} parent=1 // pred_region
      _
    $region29: #{tpu_custom_call.1} parent=1 // pred_fallthru
      _
    // Predicated region
    $region30: #{tpu_custom_call.1} parent=1 // pred_check
      _
    $region31: #{tpu_custom_call.1} parent=1 // pred_check_branch
      %29 = sbr.rel (0) target = $region33
    $region32: #{tpu_custom_call.1} parent=1 // pred_region
      _
    $region33: #{tpu_custom_call.1} parent=1 // pred_fallthru
      _
    %v31 = vld [vmem:[%s2] sm:$0xf]
    %v32 = vld [vmem:[%s2 + $0x4] sm:$0xf]
    %v33 = vld [vmem:[%s2 + $0x8] sm:$0xf]
    %v34 = vld [vmem:[%s2 + $0xc] sm:$0xf]
    %v35 = vld [vmem:[%s6] sm:$0xf]
    %v36 = vld [vmem:[%s6 + $0x4] sm:$0xf]
    %v37 = vld [vmem:[%s6 + $0x8] sm:$0xf]
    %v38 = vld [vmem:[%s6 + $0xc] sm:$0xf]
    %v39 = vld [vmem:[%s6 + $0x10] sm:$0xf]
    %v40 = vld [vmem:[%s6 + $0x14] sm:$0xf]
    %v41 = vld [vmem:[%s4] sm:$0xf]
    %v42 = vld [vmem:[%s4 + $0x4] sm:$0xf]
    %v43 = vld [vmem:[%s4 + $0x8] sm:$0xf]
    %v44 = vld [vmem:[%s4 + $0xc] sm:$0xf]
    %v45 = vld [vmem:[%s5] sm:$0x1]
    %v47 = vperm.slane %v45, 0
    %v49 = vld [vmem:[%s7] sm:$0x1]
    %v51 = vperm.slane %v49, 0
    %v53 = vld [vmem:[%s0] sm:$0xff]
    %v54 = vld [vmem:[%s0 + $0x8] sm:$0xff]
    %v55 = vld [vmem:[%s0 + $0x10] sm:$0xff]
    %v56 = vld [vmem:[%s0 + $0x18] sm:$0xff]
    %v57 = vld [vmem:[%s0 + $0x20] sm:$0xff]
    %v58 = vld [vmem:[%s0 + $0x28] sm:$0xff]
    %v59 = vld [vmem:[%s0 + $0x30] sm:$0xff]
    %v60 = vld [vmem:[%s0 + $0x38] sm:$0xff]
    %v61 = vpack.c.bf16 %v54, %v53
    %v62 = vpack.c.bf16 %v56, %v55
    %v63 = vpack.c.bf16 %v58, %v57
    %v64 = vpack.c.bf16 %v60, %v59
    %v65 = vld [vmem:[%s1] sm:$0xf]
    %v66 = vld [vmem:[%s1 + $0x4] sm:$0xf]
    %v67 = vld [vmem:[%s3] sm:$0x1]
    %v69 = vperm.slane %v67, 0
    %v73 = vunpack.c.l.b16 %v65
    %v74 = vunpack.c.l.b16 %v66
    %v75 = vpack.c.b16 %v74, %v73
    %vm77 = vcmask 130048
    %v79 = vsel %vm77, %v61, 0
    %v82 = vsel %vm77, %v62, 0
    %v85 = vsel %vm77, %v63, 0
    %v88 = vsel %vm77, %v64, 0
    %90 = vmatpush.bf16.msra.mxu0 0
    %91 = vmatpush.bf16.msra.mxu0 0
    %92 = vmatpush.bf16.msra.mxu0 0
    %93 = vmatpush.bf16.msra.mxu0 0
    %94 = vmatpush.bf16.msra.mxu0 0
    %95 = vmatpush.bf16.msra.mxu0 0
    %96 = vmatpush.bf16.msra.mxu0 0
    %97 = vmatpush.bf16.msra.mxu0 %v75
    %98 = vmatmul.bf16.gmra.mxu0 %v79
    %v99 = vpop.f32.mrf.mxu0
    %v100 = vadd.f32 %v69, %v99
    %v101 = vpop.f32.mrf.mxu0
    %v102 = vadd.f32 %v69, %v101
    %103 = vmatmul.bf16.gmra.mxu0 %v82
    %v104 = vpop.f32.mrf.mxu0
    %v105 = vadd.f32 %v69, %v104
    %v106 = vpop.f32.mrf.mxu0
    %v107 = vadd.f32 %v69, %v106
    %108 = vmatmul.bf16.gmra.mxu0 %v85
    %v109 = vpop.f32.mrf.mxu0
    %v110 = vadd.f32 %v69, %v109
    %v111 = vpop.f32.mrf.mxu0
    %v112 = vadd.f32 %v69, %v111
    %113 = vmatmul.bf16.gmra.mxu0 %v88
    %v114 = vpop.f32.mrf.mxu0
    %v115 = vadd.f32 %v69, %v114
    %v116 = vpop.f32.mrf.mxu0
    %v117 = vadd.f32 %v69, %v116
    %118 = vdwg.mxu0
    %v123 = vunpack.c.l.b16 %v31
    %v124 = vunpack.c.l.b16 %v32
    %v125 = vunpack.c.l.b16 %v33
    %v126 = vunpack.c.l.b16 %v34
    %v127 = vpack.c.b16 %v124, %v123
    %v128 = vpack.c.b16 %v126, %v125
    %vm131 = vcmask 261120
    %v133 = vsel %vm131, 0, 0
    %135 = vmatpush.bf16.msra.mxu0 0
    %136 = vmatpush.bf16.msra.mxu0 0
    %137 = vmatpush.bf16.msra.mxu0 0
    %138 = vmatpush.bf16.msra.mxu0 0
    %139 = vmatpush.bf16.msra.mxu0 0
    %140 = vmatpush.bf16.msra.mxu0 0
    %141 = vmatpush.bf16.msra.mxu0 %v128
    %142 = vmatpush.bf16.msra.mxu0 %v127
    %143 = vmatmul.bf16.gmra.mxu0 %v133
    %v144 = vpop.f32.mrf.mxu0
    %v145 = vadd.f32 0.0, %v144
    %v146 = vpop.f32.mrf.mxu0
    %147 = vdwg.mxu0
    %v148 = vadd.f32 %v100, %v145
    %v149 = vxor.u32 %v148, 2147483648
    %v150 = vmul.f32 %v149, 1.442695
    %v151 = vpow.pop %v150
    %v152 = vadd.f32 %v151, 1.0
    %v153 = vrcp.pop %v152
    %v154 = vmul.f32 %v152, %v153
    %v155 = vsub.f32 1.0, %v154
    %v156 = vmul.f32 %v153, %v155
    %v157 = vadd.f32 %v153, %v156
    %vm158 = vweird.f32 %v152
    %vm159 = vweird.f32 %v153
    %vm160 = vmor %vm158, %vm159
    %v161 = vsel %vm160, %v153, %v157
    %v162 = vand.u32 2147483647, %v152
    %vm163 = vcmp.eq.f32.partialorder %v162, 8.507059e+37
    %v164 = vand.u32 %v152, 2147483648
    %v165 = vor.u32 1.1754944e-38, %v164
    %v166 = vsel %vm163, %v165, %v161
    %v167 = vmul.f32 1.0, %v166
    %v168 = vtanh.pop %v148
    %v169 = vmul.f32 %v167, 0.0
    %171 = vrot.lane.b32.xlu0 %v168, 64
    %v172 = vpop.permute.xlu0 %171
    %v174 = vmul.f32 %v167, %v172
    %176 = vrot.lane.b32.xlu0 %v174, 32
    %v177 = vpop.permute.xlu0 %176
    %v179 = vadd.f32 %v169, %v177
    %v180 = vtanh.pop %v179
    %182 = vrot.lane.b32.xlu0 %v180, 64
    %v183 = vpop.permute.xlu0 %182
    %v185 = vmul.f32 %v167, %v183
    %v186 = vpack.c.bf16 %v185, %v185
    %188 = vrot.lane.b32.xlu0 %v186, 32
    %v189 = vpop.permute.xlu0 %188
    %v191 = vsel %vm131, %v189, 0
    %193 = vmatpush.bf16.msra.mxu0 0
    %194 = vmatpush.bf16.msra.mxu0 0
    %195 = vmatpush.bf16.msra.mxu0 0
    %196 = vmatpush.bf16.msra.mxu0 0
    %197 = vmatpush.bf16.msra.mxu0 0
    %198 = vmatpush.bf16.msra.mxu0 0
    %199 = vmatpush.bf16.msra.mxu0 %v128
    %200 = vmatpush.bf16.msra.mxu0 %v127
    %201 = vmatmul.bf16.gmra.mxu0 %v191
    %v202 = vpop.f32.mrf.mxu0
    %v203 = vadd.f32 0.0, %v202
    %v204 = vpop.f32.mrf.mxu0
    %205 = vdwg.mxu0
    %v206 = vadd.f32 %v102, %v203
    %v207 = vxor.u32 %v206, 2147483648
    %v208 = vmul.f32 %v207, 1.442695
    %v209 = vpow.pop %v208
    %v210 = vadd.f32 %v209, 1.0
    %v211 = vrcp.pop %v210
    %v212 = vmul.f32 %v210, %v211
    %v213 = vsub.f32 1.0, %v212
    %v214 = vmul.f32 %v211, %v213
    %v215 = vadd.f32 %v211, %v214
    %vm216 = vweird.f32 %v210
    %vm217 = vweird.f32 %v211
    %vm218 = vmor %vm216, %vm217
    %v219 = vsel %vm218, %v211, %v215
    %v220 = vand.u32 2147483647, %v210
    %vm221 = vcmp.eq.f32.partialorder %v220, 8.507059e+37
    %v222 = vand.u32 %v210, 2147483648
    %v223 = vor.u32 1.1754944e-38, %v222
    %v224 = vsel %vm221, %v223, %v219
    %v225 = vmul.f32 1.0, %v224
    %v226 = vtanh.pop %v206
    %v227 = vmul.f32 %v225, %v179
    %229 = vrot.lane.b32.xlu0 %v226, 64
    %v230 = vpop.permute.xlu0 %229
    %v232 = vmul.f32 %v225, %v230
    %234 = vrot.lane.b32.xlu0 %v232, 32
    %v235 = vpop.permute.xlu0 %234
    %v237 = vadd.f32 %v227, %v235
    %v238 = vtanh.pop %v237
    %240 = vrot.lane.b32.xlu0 %v238, 64
    %v241 = vpop.permute.xlu0 %240
    %v243 = vmul.f32 %v225, %v241
    %v244 = vpack.c.bf16 %v243, %v243
    %246 = vrot.lane.b32.xlu0 %v244, 32
    %v247 = vpop.permute.xlu0 %246
    %v249 = vsel %vm131, %v247, 0
    %251 = vmatpush.bf16.msra.mxu0 0
    %252 = vmatpush.bf16.msra.mxu0 0
    %253 = vmatpush.bf16.msra.mxu0 0
    %254 = vmatpush.bf16.msra.mxu0 0
    %255 = vmatpush.bf16.msra.mxu0 0
    %256 = vmatpush.bf16.msra.mxu0 0
    %257 = vmatpush.bf16.msra.mxu0 %v128
    %258 = vmatpush.bf16.msra.mxu0 %v127
    %259 = vmatmul.bf16.gmra.mxu0 %v249
    %v260 = vpop.f32.mrf.mxu0
    %v261 = vadd.f32 0.0, %v260
    %v262 = vpop.f32.mrf.mxu0
    %263 = vdwg.mxu0
    %v264 = vadd.f32 %v105, %v261
    %v265 = vxor.u32 %v264, 2147483648
    %v266 = vmul.f32 %v265, 1.442695
    %v267 = vpow.pop %v266
    %v268 = vadd.f32 %v267, 1.0
    %v269 = vrcp.pop %v268
    %v270 = vmul.f32 %v268, %v269
    %v271 = vsub.f32 1.0, %v270
    %v272 = vmul.f32 %v269, %v271
    %v273 = vadd.f32 %v269, %v272
    %vm274 = vweird.f32 %v268
    %vm275 = vweird.f32 %v269
    %vm276 = vmor %vm274, %vm275
    %v277 = vsel %vm276, %v269, %v273
    %v278 = vand.u32 2147483647, %v268
    %vm279 = vcmp.eq.f32.partialorder %v278, 8.507059e+37
    %v280 = vand.u32 %v268, 2147483648
    %v281 = vor.u32 1.1754944e-38, %v280
    %v282 = vsel %vm279, %v281, %v277
    %v283 = vmul.f32 1.0, %v282
    %v284 = vtanh.pop %v264
    %v285 = vmul.f32 %v283, %v237
    %287 = vrot.lane.b32.xlu0 %v284, 64
    %v288 = vpop.permute.xlu0 %287
    %v290 = vmul.f32 %v283, %v288
    %292 = vrot.lane.b32.xlu0 %v290, 32
    %v293 = vpop.permute.xlu0 %292
    %v295 = vadd.f32 %v285, %v293
    %v296 = vtanh.pop %v295
    %298 = vrot.lane.b32.xlu0 %v296, 64
    %v299 = vpop.permute.xlu0 %298
    %v301 = vmul.f32 %v283, %v299
    %v302 = vpack.c.bf16 %v301, %v301
    %304 = vrot.lane.b32.xlu0 %v302, 32
    %v305 = vpop.permute.xlu0 %304
    %v307 = vsel %vm131, %v305, 0
    %309 = vmatpush.bf16.msra.mxu0 0
    %310 = vmatpush.bf16.msra.mxu0 0
    %311 = vmatpush.bf16.msra.mxu0 0
    %312 = vmatpush.bf16.msra.mxu0 0
    %313 = vmatpush.bf16.msra.mxu0 0
    %314 = vmatpush.bf16.msra.mxu0 0
    %315 = vmatpush.bf16.msra.mxu0 %v128
    %316 = vmatpush.bf16.msra.mxu0 %v127
    %317 = vmatmul.bf16.gmra.mxu0 %v307
    %v318 = vpop.f32.mrf.mxu0
    %v319 = vadd.f32 0.0, %v318
    %v320 = vpop.f32.mrf.mxu0
    %321 = vdwg.mxu0
    %v322 = vadd.f32 %v107, %v319
    %v323 = vxor.u32 %v322, 2147483648
    %v324 = vmul.f32 %v323, 1.442695
    %v325 = vpow.pop %v324
    %v326 = vadd.f32 %v325, 1.0
    %v327 = vrcp.pop %v326
    %v328 = vmul.f32 %v326, %v327
    %v329 = vsub.f32 1.0, %v328
    %v330 = vmul.f32 %v327, %v329
    %v331 = vadd.f32 %v327, %v330
    %vm332 = vweird.f32 %v326
    %vm333 = vweird.f32 %v327
    %vm334 = vmor %vm332, %vm333
    %v335 = vsel %vm334, %v327, %v331
    %v336 = vand.u32 2147483647, %v326
    %vm337 = vcmp.eq.f32.partialorder %v336, 8.507059e+37
    %v338 = vand.u32 %v326, 2147483648
    %v339 = vor.u32 1.1754944e-38, %v338
    %v340 = vsel %vm337, %v339, %v335
    %v341 = vmul.f32 1.0, %v340
    %v342 = vtanh.pop %v322
    %v343 = vmul.f32 %v341, %v295
    %345 = vrot.lane.b32.xlu0 %v342, 64
    %v346 = vpop.permute.xlu0 %345
    %v348 = vmul.f32 %v341, %v346
    %350 = vrot.lane.b32.xlu0 %v348, 32
    %v351 = vpop.permute.xlu0 %350
    %v353 = vadd.f32 %v343, %v351
    %v354 = vtanh.pop %v353
    %356 = vrot.lane.b32.xlu0 %v354, 64
    %v357 = vpop.permute.xlu0 %356
    %v359 = vmul.f32 %v341, %v357
    %v360 = vpack.c.bf16 %v359, %v359
    %362 = vrot.lane.b32.xlu0 %v360, 32
    %v363 = vpop.permute.xlu0 %362
    %v365 = vsel %vm131, %v363, 0
    %367 = vmatpush.bf16.msra.mxu0 0
    %368 = vmatpush.bf16.msra.mxu0 0
    %369 = vmatpush.bf16.msra.mxu0 0
    %370 = vmatpush.bf16.msra.mxu0 0
    %371 = vmatpush.bf16.msra.mxu0 0
    %372 = vmatpush.bf16.msra.mxu0 0
    %373 = vmatpush.bf16.msra.mxu0 %v128
    %374 = vmatpush.bf16.msra.mxu0 %v127
    %375 = vmatmul.bf16.gmra.mxu0 %v365
    %v376 = vpop.f32.mrf.mxu0
    %v377 = vadd.f32 0.0, %v376
    %v378 = vpop.f32.mrf.mxu0
    %379 = vdwg.mxu0
    %v380 = vadd.f32 %v110, %v377
    %v381 = vxor.u32 %v380, 2147483648
    %v382 = vmul.f32 %v381, 1.442695
    %v383 = vpow.pop %v382
    %v384 = vadd.f32 %v383, 1.0
    %v385 = vrcp.pop %v384
    %v386 = vmul.f32 %v384, %v385
    %v387 = vsub.f32 1.0, %v386
    %v388 = vmul.f32 %v385, %v387
    %v389 = vadd.f32 %v385, %v388
    %vm390 = vweird.f32 %v384
    %vm391 = vweird.f32 %v385
    %vm392 = vmor %vm390, %vm391
    %v393 = vsel %vm392, %v385, %v389
    %v394 = vand.u32 2147483647, %v384
    %vm395 = vcmp.eq.f32.partialorder %v394, 8.507059e+37
    %v396 = vand.u32 %v384, 2147483648
    %v397 = vor.u32 1.1754944e-38, %v396
    %v398 = vsel %vm395, %v397, %v393
    %v399 = vmul.f32 1.0, %v398
    %v400 = vtanh.pop %v380
    %v401 = vmul.f32 %v399, %v353
    %403 = vrot.lane.b32.xlu0 %v400, 64
    %v404 = vpop.permute.xlu0 %403
    %v406 = vmul.f32 %v399, %v404
    %408 = vrot.lane.b32.xlu0 %v406, 32
    %v409 = vpop.permute.xlu0 %408
    %v411 = vadd.f32 %v401, %v409
    %v412 = vtanh.pop %v411
    %414 = vrot.lane.b32.xlu0 %v412, 64
    %v415 = vpop.permute.xlu0 %414
    %v417 = vmul.f32 %v399, %v415
    %v418 = vpack.c.bf16 %v417, %v417
    %420 = vrot.lane.b32.xlu0 %v418, 32
    %v421 = vpop.permute.xlu0 %420
    %v423 = vsel %vm131, %v421, 0
    %425 = vmatpush.bf16.msra.mxu0 0
    %426 = vmatpush.bf16.msra.mxu0 0
    %427 = vmatpush.bf16.msra.mxu0 0
    %428 = vmatpush.bf16.msra.mxu0 0
    %429 = vmatpush.bf16.msra.mxu0 0
    %430 = vmatpush.bf16.msra.mxu0 0
    %431 = vmatpush.bf16.msra.mxu0 %v128
    %432 = vmatpush.bf16.msra.mxu0 %v127
    %433 = vmatmul.bf16.gmra.mxu0 %v423
    %v434 = vpop.f32.mrf.mxu0
    %v435 = vadd.f32 0.0, %v434
    %v436 = vpop.f32.mrf.mxu0
    %437 = vdwg.mxu0
    %v438 = vadd.f32 %v112, %v435
    %v439 = vxor.u32 %v438, 2147483648
    %v440 = vmul.f32 %v439, 1.442695
    %v441 = vpow.pop %v440
    %v442 = vadd.f32 %v441, 1.0
    %v443 = vrcp.pop %v442
    %v444 = vmul.f32 %v442, %v443
    %v445 = vsub.f32 1.0, %v444
    %v446 = vmul.f32 %v443, %v445
    %v447 = vadd.f32 %v443, %v446
    %vm448 = vweird.f32 %v442
    %vm449 = vweird.f32 %v443
    %vm450 = vmor %vm448, %vm449
    %v451 = vsel %vm450, %v443, %v447
    %v452 = vand.u32 2147483647, %v442
    %vm453 = vcmp.eq.f32.partialorder %v452, 8.507059e+37
    %v454 = vand.u32 %v442, 2147483648
    %v455 = vor.u32 1.1754944e-38, %v454
    %v456 = vsel %vm453, %v455, %v451
    %v457 = vmul.f32 1.0, %v456
    %v458 = vtanh.pop %v438
    %v459 = vmul.f32 %v457, %v411
    %461 = vrot.lane.b32.xlu0 %v458, 64
    %v462 = vpop.permute.xlu0 %461
    %v464 = vmul.f32 %v457, %v462
    %466 = vrot.lane.b32.xlu0 %v464, 32
    %v467 = vpop.permute.xlu0 %466
    %v469 = vadd.f32 %v459, %v467
    %v470 = vtanh.pop %v469
    %472 = vrot.lane.b32.xlu0 %v470, 64
    %v473 = vpop.permute.xlu0 %472
    %v475 = vmul.f32 %v457, %v473
    %v476 = vpack.c.bf16 %v475, %v475
    %478 = vrot.lane.b32.xlu0 %v476, 32
    %v479 = vpop.permute.xlu0 %478
    %v481 = vsel %vm131, %v479, 0
    %483 = vmatpush.bf16.msra.mxu0 0
    %484 = vmatpush.bf16.msra.mxu0 0
    %485 = vmatpush.bf16.msra.mxu0 0
    %486 = vmatpush.bf16.msra.mxu0 0
    %487 = vmatpush.bf16.msra.mxu0 0
    %488 = vmatpush.bf16.msra.mxu0 0
    %489 = vmatpush.bf16.msra.mxu0 %v128
    %490 = vmatpush.bf16.msra.mxu0 %v127
    %491 = vmatmul.bf16.gmra.mxu0 %v481
    %v492 = vpop.f32.mrf.mxu0
    %v493 = vadd.f32 0.0, %v492
    %v494 = vpop.f32.mrf.mxu0
    %495 = vdwg.mxu0
    %v496 = vadd.f32 %v115, %v493
    %v497 = vxor.u32 %v496, 2147483648
    %v498 = vmul.f32 %v497, 1.442695
    %v499 = vpow.pop %v498
    %v500 = vadd.f32 %v499, 1.0
    %v501 = vrcp.pop %v500
    %v502 = vmul.f32 %v500, %v501
    %v503 = vsub.f32 1.0, %v502
    %v504 = vmul.f32 %v501, %v503
    %v505 = vadd.f32 %v501, %v504
    %vm506 = vweird.f32 %v500
    %vm507 = vweird.f32 %v501
    %vm508 = vmor %vm506, %vm507
    %v509 = vsel %vm508, %v501, %v505
    %v510 = vand.u32 2147483647, %v500
    %vm511 = vcmp.eq.f32.partialorder %v510, 8.507059e+37
    %v512 = vand.u32 %v500, 2147483648
    %v513 = vor.u32 1.1754944e-38, %v512
    %v514 = vsel %vm511, %v513, %v509
    %v515 = vmul.f32 1.0, %v514
    %v516 = vtanh.pop %v496
    %v517 = vmul.f32 %v515, %v469
    %519 = vrot.lane.b32.xlu0 %v516, 64
    %v520 = vpop.permute.xlu0 %519
    %v522 = vmul.f32 %v515, %v520
    %524 = vrot.lane.b32.xlu0 %v522, 32
    %v525 = vpop.permute.xlu0 %524
    %v527 = vadd.f32 %v517, %v525
    %v528 = vtanh.pop %v527
    %530 = vrot.lane.b32.xlu0 %v528, 64
    %v531 = vpop.permute.xlu0 %530
    %v533 = vmul.f32 %v515, %v531
    %v534 = vpack.c.bf16 %v533, %v533
    %536 = vrot.lane.b32.xlu0 %v534, 32
    %v537 = vpop.permute.xlu0 %536
    %v539 = vsel %vm131, %v537, 0
    %541 = vmatpush.bf16.msra.mxu0 0
    %542 = vmatpush.bf16.msra.mxu0 0
    %543 = vmatpush.bf16.msra.mxu0 0
    %544 = vmatpush.bf16.msra.mxu0 0
    %545 = vmatpush.bf16.msra.mxu0 0
    %546 = vmatpush.bf16.msra.mxu0 0
    %547 = vmatpush.bf16.msra.mxu0 %v128
    %548 = vmatpush.bf16.msra.mxu0 %v127
    %549 = vmatmul.bf16.gmra.mxu0 %v539
    %v550 = vpop.f32.mrf.mxu0
    %v551 = vadd.f32 0.0, %v550
    %v552 = vpop.f32.mrf.mxu0
    %553 = vdwg.mxu0
    %v554 = vadd.f32 %v117, %v551
    %v555 = vxor.u32 %v554, 2147483648
    %v556 = vmul.f32 %v555, 1.442695
    %v557 = vpow.pop %v556
    %v558 = vadd.f32 %v557, 1.0
    %v559 = vrcp.pop %v558
    %v560 = vmul.f32 %v558, %v559
    %v561 = vsub.f32 1.0, %v560
    %v562 = vmul.f32 %v559, %v561
    %v563 = vadd.f32 %v559, %v562
    %vm564 = vweird.f32 %v558
    %vm565 = vweird.f32 %v559
    %vm566 = vmor %vm564, %vm565
    %v567 = vsel %vm566, %v559, %v563
    %v568 = vand.u32 2147483647, %v558
    %vm569 = vcmp.eq.f32.partialorder %v568, 8.507059e+37
    %v570 = vand.u32 %v558, 2147483648
    %v571 = vor.u32 1.1754944e-38, %v570
    %v572 = vsel %vm569, %v571, %v567
    %v573 = vmul.f32 1.0, %v572
    %v574 = vtanh.pop %v554
    %v575 = vmul.f32 %v573, %v527
    %577 = vrot.lane.b32.xlu0 %v574, 64
    %v578 = vpop.permute.xlu0 %577
    %v580 = vmul.f32 %v573, %v578
    %582 = vrot.lane.b32.xlu0 %v580, 32
    %v583 = vpop.permute.xlu0 %582
    %v585 = vadd.f32 %v575, %v583
    %v586 = vtanh.pop %v585
    %588 = vrot.lane.b32.xlu0 %v586, 64
    %v589 = vpop.permute.xlu0 %588
    %v591 = vmul.f32 %v573, %v589
    %v592 = vpack.c.bf16 %v591, %v591
    %v594 = vunpack.c.l.b16 %v592
    %v595 = vpack.c.b16 %v594, %v594
    %596 = vrot.lane.b32.xlu0 %v595, 32
    %v597 = vpop.permute.xlu0 %596
    %v602 = vunpack.c.l.b16 %v41
    %v603 = vunpack.c.l.b16 %v42
    %v604 = vunpack.c.l.b16 %v43
    %v605 = vunpack.c.l.b16 %v44
    %v606 = vpack.c.b16 %v603, %v602
    %v607 = vpack.c.b16 %v605, %v604
    %v611 = vsel %vm131, %v597, 0
    %613 = vmatpush.bf16.msra.mxu0 0
    %614 = vmatpush.bf16.msra.mxu0 0
    %615 = vmatpush.bf16.msra.mxu0 0
    %616 = vmatpush.bf16.msra.mxu0 0
    %617 = vmatpush.bf16.msra.mxu0 0
    %618 = vmatpush.bf16.msra.mxu0 0
    %619 = vmatpush.bf16.msra.mxu0 %v607
    %620 = vmatpush.bf16.msra.mxu0 %v606
    %621 = vmatmul.bf16.gmra.mxu0 %v611
    %v622 = vpop.f32.mrf.mxu0
    %v623 = vadd.f32 %v47, %v622
    %v624 = vpop.f32.mrf.mxu0
    %625 = vdwg.mxu0
    %v626 = vmax.f32 %v623, 0.0
    %v627 = vpack.c.bf16 %v626, %v626
    %v629 = vunpack.c.l.b16 %v627
    %v630 = vpack.c.b16 %v629, %v629
    %631 = vrot.lane.b32.xlu0 %v630, 32
    %v632 = vpop.permute.xlu0 %631
    %v634 = vsel %vm131, %v597, %v632
    %v641 = vunpack.c.l.b16 %v35
    %v642 = vunpack.c.l.b16 %v36
    %v643 = vunpack.c.l.b16 %v37
    %v644 = vunpack.c.l.b16 %v38
    %v645 = vunpack.c.l.b16 %v39
    %v646 = vunpack.c.l.b16 %v40
    %v647 = vpack.c.b16 %v642, %v641
    %v648 = vpack.c.b16 %v644, %v643
    %v649 = vpack.c.b16 %v646, %v645
    %vm653 = vcmask 392192
    %v654 = vsel %vm653, %v634, 0
    %656 = vmatpush.bf16.msra.mxu0 0
    %657 = vmatpush.bf16.msra.mxu0 0
    %658 = vmatpush.bf16.msra.mxu0 0
    %659 = vmatpush.bf16.msra.mxu0 0
    %660 = vmatpush.bf16.msra.mxu0 0
    %661 = vmatpush.bf16.msra.mxu0 %v649
    %662 = vmatpush.bf16.msra.mxu0 %v648
    %663 = vmatpush.bf16.msra.mxu0 %v647
    %664 = vmatmul.bf16.gmra.mxu0 %v654
    %v665 = vpop.f32.mrf.mxu0
    %v666 = vadd.f32 %v51, %v665
    %v667 = vpop.f32.mrf.mxu0
    %668 = vdwg.mxu0
    %v669 = vxor.u32 %v666, 2147483648
    %v670 = vmul.f32 %v669, 1.442695
    %v671 = vpow.pop %v670
    %v672 = vadd.f32 %v671, 1.0
    %v673 = vrcp.pop %v672
    %v674 = vmul.f32 %v672, %v673
    %v675 = vsub.f32 1.0, %v674
    %v676 = vmul.f32 %v673, %v675
    %v677 = vadd.f32 %v673, %v676
    %vm678 = vweird.f32 %v672
    %vm679 = vweird.f32 %v673
    %vm680 = vmor %vm678, %vm679
    %v681 = vsel %vm680, %v673, %v677
    %v682 = vand.u32 2147483647, %v672
    %vm683 = vcmp.eq.f32.partialorder %v682, 8.507059e+37
    %v684 = vand.u32 %v672, 2147483648
    %v685 = vor.u32 1.1754944e-38, %v684
    %v686 = vsel %vm683, %v685, %v681
    %v687 = vmul.f32 1.0, %v686
    %v688 = vtanh.pop %v666
    %690 = vrot.lane.b32.xlu0 %v688, 64
    %v691 = vpop.permute.xlu0 %690
    %v693 = vmul.f32 %v687, %v691
    %v694 = vtanh.pop %v693
    %696 = vrot.lane.b32.xlu0 %v694, 96
    %v697 = vpop.permute.xlu0 %696
    %v699 = vmul.f32 %v687, %v697
    %v700 = vpack.c.bf16 %v699, %v699
    %v702 = vunpack.c.l.b16 %v700
    %v703 = vpack.c.b16 %v702, %v702
    %704 = vrot.lane.b32.xlu0 %v703, 32
    %v705 = vpop.permute.xlu0 %704
    %v707 = vsel %vm131, %v705, 0
    %709 = vmatpush.bf16.msra.mxu0 0
    %710 = vmatpush.bf16.msra.mxu0 0
    %711 = vmatpush.bf16.msra.mxu0 0
    %712 = vmatpush.bf16.msra.mxu0 0
    %713 = vmatpush.bf16.msra.mxu0 0
    %714 = vmatpush.bf16.msra.mxu0 0
    %715 = vmatpush.bf16.msra.mxu0 %v607
    %716 = vmatpush.bf16.msra.mxu0 %v606
    %717 = vmatmul.bf16.gmra.mxu0 %v707
    %v718 = vpop.f32.mrf.mxu0
    %v719 = vadd.f32 %v47, %v718
    %v720 = vpop.f32.mrf.mxu0
    %721 = vdwg.mxu0
    %v722 = vmax.f32 %v719, 0.0
    %v723 = vpack.c.bf16 %v722, %v722
    %v725 = vunpack.c.l.b16 %v723
    %v726 = vpack.c.b16 %v725, %v725
    %727 = vrot.lane.b32.xlu0 %v726, 32
    %v728 = vpop.permute.xlu0 %727
    %v730 = vsel %vm131, %v705, %v728
    %v731 = vsel %vm653, %v730, 0
    %733 = vmatpush.bf16.msra.mxu0 0
    %734 = vmatpush.bf16.msra.mxu0 0
    %735 = vmatpush.bf16.msra.mxu0 0
    %736 = vmatpush.bf16.msra.mxu0 0
    %737 = vmatpush.bf16.msra.mxu0 0
    %738 = vmatpush.bf16.msra.mxu0 %v649
    %739 = vmatpush.bf16.msra.mxu0 %v648
    %740 = vmatpush.bf16.msra.mxu0 %v647
    %741 = vmatmul.bf16.gmra.mxu0 %v731
    %v742 = vpop.f32.mrf.mxu0
    %v743 = vadd.f32 %v51, %v742
    %v744 = vpop.f32.mrf.mxu0
    %745 = vdwg.mxu0
    %v746 = vxor.u32 %v743, 2147483648
    %v747 = vmul.f32 %v746, 1.442695
    %v748 = vpow.pop %v747
    %v749 = vadd.f32 %v748, 1.0
    %v750 = vrcp.pop %v749
    %v751 = vmul.f32 %v749, %v750
    %v752 = vsub.f32 1.0, %v751
    %v753 = vmul.f32 %v750, %v752
    %v754 = vadd.f32 %v750, %v753
    %vm755 = vweird.f32 %v749
    %vm756 = vweird.f32 %v750
    %vm757 = vmor %vm755, %vm756
    %v758 = vsel %vm757, %v750, %v754
    %v759 = vand.u32 2147483647, %v749
    %vm760 = vcmp.eq.f32.partialorder %v759, 8.507059e+37
    %v761 = vand.u32 %v749, 2147483648
    %v762 = vor.u32 1.1754944e-38, %v761
    %v763 = vsel %vm760, %v762, %v758
    %v764 = vmul.f32 1.0, %v763
    %v765 = vtanh.pop %v743
    %767 = vrot.lane.b32.xlu0 %v765, 64
    %v768 = vpop.permute.xlu0 %767
    %v770 = vmul.f32 %v764, %v768
    %v771 = vtanh.pop %v770
    %773 = vrot.lane.b32.xlu0 %v771, 96
    %v774 = vpop.permute.xlu0 %773
    %v776 = vmul.f32 %v764, %v774
    %v777 = vpack.c.bf16 %v776, %v776
    %v779 = vunpack.c.l.b16 %v777
    %v780 = vpack.c.b16 %v779, %v779
    %781 = vrot.lane.b32.xlu0 %v780, 32
    %v782 = vpop.permute.xlu0 %781
    %v784 = vsel %vm131, %v782, 0
    %786 = vmatpush.bf16.msra.mxu0 0
    %787 = vmatpush.bf16.msra.mxu0 0
    %788 = vmatpush.bf16.msra.mxu0 0
    %789 = vmatpush.bf16.msra.mxu0 0
    %790 = vmatpush.bf16.msra.mxu0 0
    %791 = vmatpush.bf16.msra.mxu0 0
    %792 = vmatpush.bf16.msra.mxu0 %v607
    %793 = vmatpush.bf16.msra.mxu0 %v606
    %794 = vmatmul.bf16.gmra.mxu0 %v784
    %v795 = vpop.f32.mrf.mxu0
    %v796 = vadd.f32 %v47, %v795
    %v797 = vpop.f32.mrf.mxu0
    %798 = vdwg.mxu0
    %v799 = vmax.f32 %v796, 0.0
    %v800 = vpack.c.bf16 %v799, %v799
    %v802 = vunpack.c.l.b16 %v800
    %v803 = vpack.c.b16 %v802, %v802
    %804 = vrot.lane.b32.xlu0 %v803, 32
    %v805 = vpop.permute.xlu0 %804
    %v807 = vsel %vm131, %v782, %v805
    %v808 = vsel %vm653, %v807, 0
    %810 = vmatpush.bf16.msra.mxu0 0
    %811 = vmatpush.bf16.msra.mxu0 0
    %812 = vmatpush.bf16.msra.mxu0 0
    %813 = vmatpush.bf16.msra.mxu0 0
    %814 = vmatpush.bf16.msra.mxu0 0
    %815 = vmatpush.bf16.msra.mxu0 %v649
    %816 = vmatpush.bf16.msra.mxu0 %v648
    %817 = vmatpush.bf16.msra.mxu0 %v647
    %818 = vmatmul.bf16.gmra.mxu0 %v808
    %v819 = vpop.f32.mrf.mxu0
    %v820 = vadd.f32 %v51, %v819
    %v821 = vpop.f32.mrf.mxu0
    %822 = vdwg.mxu0
    %v823 = vxor.u32 %v820, 2147483648
    %v824 = vmul.f32 %v823, 1.442695
    %v825 = vpow.pop %v824
    %v826 = vadd.f32 %v825, 1.0
    %v827 = vrcp.pop %v826
    %v828 = vmul.f32 %v826, %v827
    %v829 = vsub.f32 1.0, %v828
    %v830 = vmul.f32 %v827, %v829
    %v831 = vadd.f32 %v827, %v830
    %vm832 = vweird.f32 %v826
    %vm833 = vweird.f32 %v827
    %vm834 = vmor %vm832, %vm833
    %v835 = vsel %vm834, %v827, %v831
    %v836 = vand.u32 2147483647, %v826
    %vm837 = vcmp.eq.f32.partialorder %v836, 8.507059e+37
    %v838 = vand.u32 %v826, 2147483648
    %v839 = vor.u32 1.1754944e-38, %v838
    %v840 = vsel %vm837, %v839, %v835
    %v841 = vmul.f32 1.0, %v840
    %v842 = vtanh.pop %v820
    %844 = vrot.lane.b32.xlu0 %v842, 64
    %v845 = vpop.permute.xlu0 %844
    %v847 = vmul.f32 %v841, %v845
    %v848 = vtanh.pop %v847
    %850 = vrot.lane.b32.xlu0 %v848, 96
    %v851 = vpop.permute.xlu0 %850
    %v853 = vmul.f32 %v841, %v851
    %v854 = vpack.c.bf16 %v853, %v853
    %v856 = vunpack.c.l.b16 %v854
    %v857 = vpack.c.b16 %v856, %v856
    %858 = vrot.lane.b32.xlu0 %v857, 32
    %v859 = vpop.permute.xlu0 %858
    %v861 = vsel %vm131, %v859, 0
    %863 = vmatpush.bf16.msra.mxu0 0
    %864 = vmatpush.bf16.msra.mxu0 0
    %865 = vmatpush.bf16.msra.mxu0 0
    %866 = vmatpush.bf16.msra.mxu0 0
    %867 = vmatpush.bf16.msra.mxu0 0
    %868 = vmatpush.bf16.msra.mxu0 0
    %869 = vmatpush.bf16.msra.mxu0 %v607
    %870 = vmatpush.bf16.msra.mxu0 %v606
    %871 = vmatmul.bf16.gmra.mxu0 %v861
    %v872 = vpop.f32.mrf.mxu0
    %v873 = vadd.f32 %v47, %v872
    %v874 = vpop.f32.mrf.mxu0
    %875 = vdwg.mxu0
    %v876 = vmax.f32 %v873, 0.0
    %v877 = vpack.c.bf16 %v876, %v876
    %v879 = vunpack.c.l.b16 %v877
    %v880 = vpack.c.b16 %v879, %v879
    %881 = vrot.lane.b32.xlu0 %v880, 32
    %v882 = vpop.permute.xlu0 %881
    %v884 = vsel %vm131, %v859, %v882
    %v885 = vsel %vm653, %v884, 0
    %887 = vmatpush.bf16.msra.mxu0 0
    %888 = vmatpush.bf16.msra.mxu0 0
    %889 = vmatpush.bf16.msra.mxu0 0
    %890 = vmatpush.bf16.msra.mxu0 0
    %891 = vmatpush.bf16.msra.mxu0 0
    %892 = vmatpush.bf16.msra.mxu0 %v649
    %893 = vmatpush.bf16.msra.mxu0 %v648
    %894 = vmatpush.bf16.msra.mxu0 %v647
    %895 = vmatmul.bf16.gmra.mxu0 %v885
    %v896 = vpop.f32.mrf.mxu0
    %v897 = vadd.f32 %v51, %v896
    %v898 = vpop.f32.mrf.mxu0
    %899 = vdwg.mxu0
    %v900 = vxor.u32 %v897, 2147483648
    %v901 = vmul.f32 %v900, 1.442695
    %v902 = vpow.pop %v901
    %v903 = vadd.f32 %v902, 1.0
    %v904 = vrcp.pop %v903
    %v905 = vmul.f32 %v903, %v904
    %v906 = vsub.f32 1.0, %v905
    %v907 = vmul.f32 %v904, %v906
    %v908 = vadd.f32 %v904, %v907
    %vm909 = vweird.f32 %v903
    %vm910 = vweird.f32 %v904
    %vm911 = vmor %vm909, %vm910
    %v912 = vsel %vm911, %v904, %v908
    %v913 = vand.u32 2147483647, %v903
    %vm914 = vcmp.eq.f32.partialorder %v913, 8.507059e+37
    %v915 = vand.u32 %v903, 2147483648
    %v916 = vor.u32 1.1754944e-38, %v915
    %v917 = vsel %vm914, %v916, %v912
    %v918 = vmul.f32 1.0, %v917
    %v919 = vtanh.pop %v897
    %921 = vrot.lane.b32.xlu0 %v919, 64
    %v922 = vpop.permute.xlu0 %921
    %v924 = vmul.f32 %v918, %v922
    %v925 = vtanh.pop %v924
    %927 = vrot.lane.b32.xlu0 %v925, 96
    %v928 = vpop.permute.xlu0 %927
    %v930 = vmul.f32 %v918, %v928
    %v931 = vpack.c.bf16 %v930, %v930
    %v933 = vunpack.c.l.b16 %v931
    %v934 = vpack.c.b16 %v933, %v933
    %935 = vrot.lane.b32.xlu0 %v934, 32
    %v936 = vpop.permute.xlu0 %935
    %v938 = vsel %vm131, %v936, 0
    %940 = vmatpush.bf16.msra.mxu0 0
    %941 = vmatpush.bf16.msra.mxu0 0
    %942 = vmatpush.bf16.msra.mxu0 0
    %943 = vmatpush.bf16.msra.mxu0 0
    %944 = vmatpush.bf16.msra.mxu0 0
    %945 = vmatpush.bf16.msra.mxu0 0
    %946 = vmatpush.bf16.msra.mxu0 %v607
    %947 = vmatpush.bf16.msra.mxu0 %v606
    %948 = vmatmul.bf16.gmra.mxu0 %v938
    %v949 = vpop.f32.mrf.mxu0
    %v950 = vadd.f32 %v47, %v949
    %v951 = vpop.f32.mrf.mxu0
    %952 = vdwg.mxu0
    %v953 = vmax.f32 %v950, 0.0
    %v954 = vpack.c.bf16 %v953, %v953
    %v956 = vunpack.c.l.b16 %v954
    %v957 = vpack.c.b16 %v956, %v956
    %958 = vrot.lane.b32.xlu0 %v957, 32
    %v959 = vpop.permute.xlu0 %958
    %v961 = vsel %vm131, %v936, %v959
    %v962 = vsel %vm653, %v961, 0
    %964 = vmatpush.bf16.msra.mxu0 0
    %965 = vmatpush.bf16.msra.mxu0 0
    %966 = vmatpush.bf16.msra.mxu0 0
    %967 = vmatpush.bf16.msra.mxu0 0
    %968 = vmatpush.bf16.msra.mxu0 0
    %969 = vmatpush.bf16.msra.mxu0 %v649
    %970 = vmatpush.bf16.msra.mxu0 %v648
    %971 = vmatpush.bf16.msra.mxu0 %v647
    %972 = vmatmul.bf16.gmra.mxu0 %v962
    %v973 = vpop.f32.mrf.mxu0
    %v974 = vadd.f32 %v51, %v973
    %v975 = vpop.f32.mrf.mxu0
    %976 = vdwg.mxu0
    %v977 = vxor.u32 %v974, 2147483648
    %v978 = vmul.f32 %v977, 1.442695
    %v979 = vpow.pop %v978
    %v980 = vadd.f32 %v979, 1.0
    %v981 = vrcp.pop %v980
    %v982 = vmul.f32 %v980, %v981
    %v983 = vsub.f32 1.0, %v982
    %v984 = vmul.f32 %v981, %v983
    %v985 = vadd.f32 %v981, %v984
    %vm986 = vweird.f32 %v980
    %vm987 = vweird.f32 %v981
    %vm988 = vmor %vm986, %vm987
    %v989 = vsel %vm988, %v981, %v985
    %v990 = vand.u32 2147483647, %v980
    %vm991 = vcmp.eq.f32.partialorder %v990, 8.507059e+37
    %v992 = vand.u32 %v980, 2147483648
    %v993 = vor.u32 1.1754944e-38, %v992
    %v994 = vsel %vm991, %v993, %v989
    %v995 = vmul.f32 1.0, %v994
    %v996 = vtanh.pop %v974
    %998 = vrot.lane.b32.xlu0 %v996, 64
    %v999 = vpop.permute.xlu0 %998
    %v1001 = vmul.f32 %v995, %v999
    %v1002 = vtanh.pop %v1001
    %1004 = vrot.lane.b32.xlu0 %v1002, 96
    %v1005 = vpop.permute.xlu0 %1004
    %v1007 = vmul.f32 %v995, %v1005
    %v1008 = vpack.c.bf16 %v1007, %v1007
    %v1010 = vunpack.c.l.b16 %v1008
    %v1011 = vpack.c.b16 %v1010, %v1010
    %1012 = vrot.lane.b32.xlu0 %v1011, 32
    %v1013 = vpop.permute.xlu0 %1012
    %v1015 = vsel %vm131, %v1013, 0
    %1017 = vmatpush.bf16.msra.mxu0 0
    %1018 = vmatpush.bf16.msra.mxu0 0
    %1019 = vmatpush.bf16.msra.mxu0 0
    %1020 = vmatpush.bf16.msra.mxu0 0
    %1021 = vmatpush.bf16.msra.mxu0 0
    %1022 = vmatpush.bf16.msra.mxu0 0
    %1023 = vmatpush.bf16.msra.mxu0 %v607
    %1024 = vmatpush.bf16.msra.mxu0 %v606
    %1025 = vmatmul.bf16.gmra.mxu0 %v1015
    %v1026 = vpop.f32.mrf.mxu0
    %v1027 = vadd.f32 %v47, %v1026
    %v1028 = vpop.f32.mrf.mxu0
    %1029 = vdwg.mxu0
    %v1030 = vmax.f32 %v1027, 0.0
    %v1031 = vpack.c.bf16 %v1030, %v1030
    %v1033 = vunpack.c.l.b16 %v1031
    %v1034 = vpack.c.b16 %v1033, %v1033
    %1035 = vrot.lane.b32.xlu0 %v1034, 32
    %v1036 = vpop.permute.xlu0 %1035
    %v1038 = vsel %vm131, %v1013, %v1036
    %v1039 = vsel %vm653, %v1038, 0
    %1041 = vmatpush.bf16.msra.mxu0 0
    %1042 = vmatpush.bf16.msra.mxu0 0
    %1043 = vmatpush.bf16.msra.mxu0 0
    %1044 = vmatpush.bf16.msra.mxu0 0
    %1045 = vmatpush.bf16.msra.mxu0 0
    %1046 = vmatpush.bf16.msra.mxu0 %v649
    %1047 = vmatpush.bf16.msra.mxu0 %v648
    %1048 = vmatpush.bf16.msra.mxu0 %v647
    %1049 = vmatmul.bf16.gmra.mxu0 %v1039
    %v1050 = vpop.f32.mrf.mxu0
    %v1051 = vadd.f32 %v51, %v1050
    %v1052 = vpop.f32.mrf.mxu0
    %1053 = vdwg.mxu0
    %v1054 = vxor.u32 %v1051, 2147483648
    %v1055 = vmul.f32 %v1054, 1.442695
    %v1056 = vpow.pop %v1055
    %v1057 = vadd.f32 %v1056, 1.0
    %v1058 = vrcp.pop %v1057
    %v1059 = vmul.f32 %v1057, %v1058
    %v1060 = vsub.f32 1.0, %v1059
    %v1061 = vmul.f32 %v1058, %v1060
    %v1062 = vadd.f32 %v1058, %v1061
    %vm1063 = vweird.f32 %v1057
    %vm1064 = vweird.f32 %v1058
    %vm1065 = vmor %vm1063, %vm1064
    %v1066 = vsel %vm1065, %v1058, %v1062
    %v1067 = vand.u32 2147483647, %v1057
    %vm1068 = vcmp.eq.f32.partialorder %v1067, 8.507059e+37
    %v1069 = vand.u32 %v1057, 2147483648
    %v1070 = vor.u32 1.1754944e-38, %v1069
    %v1071 = vsel %vm1068, %v1070, %v1066
    %v1072 = vmul.f32 1.0, %v1071
    %v1073 = vtanh.pop %v1051
    %1075 = vrot.lane.b32.xlu0 %v1073, 64
    %v1076 = vpop.permute.xlu0 %1075
    %v1078 = vmul.f32 %v1072, %v1076
    %v1079 = vtanh.pop %v1078
    %1081 = vrot.lane.b32.xlu0 %v1079, 96
    %v1082 = vpop.permute.xlu0 %1081
    %v1084 = vmul.f32 %v1072, %v1082
    %v1085 = vpack.c.bf16 %v1084, %v1084
    %v1087 = vunpack.c.l.b16 %v1085
    %v1088 = vpack.c.b16 %v1087, %v1087
    %1089 = vrot.lane.b32.xlu0 %v1088, 32
    %v1090 = vpop.permute.xlu0 %1089
    %v1092 = vsel %vm131, %v1090, 0
    %1094 = vmatpush.bf16.msra.mxu0 0
    %1095 = vmatpush.bf16.msra.mxu0 0
    %1096 = vmatpush.bf16.msra.mxu0 0
    %1097 = vmatpush.bf16.msra.mxu0 0
    %1098 = vmatpush.bf16.msra.mxu0 0
    %1099 = vmatpush.bf16.msra.mxu0 0
    %1100 = vmatpush.bf16.msra.mxu0 %v607
    %1101 = vmatpush.bf16.msra.mxu0 %v606
    %1102 = vmatmul.bf16.gmra.mxu0 %v1092
    %v1103 = vpop.f32.mrf.mxu0
    %v1104 = vadd.f32 %v47, %v1103
    %v1105 = vpop.f32.mrf.mxu0
    %1106 = vdwg.mxu0
    %v1107 = vmax.f32 %v1104, 0.0
    %v1108 = vpack.c.bf16 %v1107, %v1107
    %v1110 = vunpack.c.l.b16 %v1108
    %v1111 = vpack.c.b16 %v1110, %v1110
    %1112 = vrot.lane.b32.xlu0 %v1111, 32
    %v1113 = vpop.permute.xlu0 %1112
    %v1115 = vsel %vm131, %v1090, %v1113
    %v1116 = vsel %vm653, %v1115, 0
    %1118 = vmatpush.bf16.msra.mxu0 0
    %1119 = vmatpush.bf16.msra.mxu0 0
    %1120 = vmatpush.bf16.msra.mxu0 0
    %1121 = vmatpush.bf16.msra.mxu0 0
    %1122 = vmatpush.bf16.msra.mxu0 0
    %1123 = vmatpush.bf16.msra.mxu0 %v649
    %1124 = vmatpush.bf16.msra.mxu0 %v648
    %1125 = vmatpush.bf16.msra.mxu0 %v647
    %1126 = vmatmul.bf16.gmra.mxu0 %v1116
    %v1127 = vpop.f32.mrf.mxu0
    %v1128 = vadd.f32 %v51, %v1127
    %v1129 = vpop.f32.mrf.mxu0
    %1130 = vdwg.mxu0
    %v1131 = vxor.u32 %v1128, 2147483648
    %v1132 = vmul.f32 %v1131, 1.442695
    %v1133 = vpow.pop %v1132
    %v1134 = vadd.f32 %v1133, 1.0
    %v1135 = vrcp.pop %v1134
    %v1136 = vmul.f32 %v1134, %v1135
    %v1137 = vsub.f32 1.0, %v1136
    %v1138 = vmul.f32 %v1135, %v1137
    %v1139 = vadd.f32 %v1135, %v1138
    %vm1140 = vweird.f32 %v1134
    %vm1141 = vweird.f32 %v1135
    %vm1142 = vmor %vm1140, %vm1141
    %v1143 = vsel %vm1142, %v1135, %v1139
    %v1144 = vand.u32 2147483647, %v1134
    %vm1145 = vcmp.eq.f32.partialorder %v1144, 8.507059e+37
    %v1146 = vand.u32 %v1134, 2147483648
    %v1147 = vor.u32 1.1754944e-38, %v1146
    %v1148 = vsel %vm1145, %v1147, %v1143
    %v1149 = vmul.f32 1.0, %v1148
    %v1150 = vtanh.pop %v1128
    %1152 = vrot.lane.b32.xlu0 %v1150, 64
    %v1153 = vpop.permute.xlu0 %1152
    %v1155 = vmul.f32 %v1149, %v1153
    %v1156 = vtanh.pop %v1155
    %1158 = vrot.lane.b32.xlu0 %v1156, 96
    %v1159 = vpop.permute.xlu0 %1158
    %v1161 = vmul.f32 %v1149, %v1159
    %v1162 = vpack.c.bf16 %v1161, %v1161
    %1164 = vrot.lane.b32.xlu0 %v1162, 32
    %v1165 = vpop.permute.xlu0 %1164
    %v1167 = vsel %vm131, %v1165, 0
    %1169 = vmatpush.bf16.msra.mxu0 0
    %1170 = vmatpush.bf16.msra.mxu0 0
    %1171 = vmatpush.bf16.msra.mxu0 0
    %1172 = vmatpush.bf16.msra.mxu0 0
    %1173 = vmatpush.bf16.msra.mxu0 0
    %1174 = vmatpush.bf16.msra.mxu0 0
    %1175 = vmatpush.bf16.msra.mxu0 %v607
    %1176 = vmatpush.bf16.msra.mxu0 %v606
    %1177 = vmatmul.bf16.gmra.mxu0 %v1167
    %v1178 = vpop.f32.mrf.mxu0
    %v1179 = vadd.f32 %v47, %v1178
    %v1180 = vpop.f32.mrf.mxu0
    %1181 = vdwg.mxu0
    %v1182 = vmax.f32 %v1179, 0.0
    %1184 = vrot.lane.b32.xlu0 %v722, 16
    %v1185 = vpop.permute.xlu0 %1184
    %1188 = vrot.lane.b32.xlu0 %v799, 32
    %v1189 = vpop.permute.xlu0 %1188
    %1192 = vrot.lane.b32.xlu0 %v876, 48
    %v1193 = vpop.permute.xlu0 %1192
    %1196 = vrot.lane.b32.xlu0 %v953, 64
    %v1197 = vpop.permute.xlu0 %1196
    %1200 = vrot.lane.b32.xlu0 %v1030, 80
    %v1201 = vpop.permute.xlu0 %1200
    %1204 = vrot.lane.b32.xlu0 %v1107, 96
    %v1205 = vpop.permute.xlu0 %1204
    %1208 = vrot.lane.b32.xlu0 %v1182, 112
    %v1209 = vpop.permute.xlu0 %1208
    %v1211 = vsel %vm77, %v626, %v1185
    %v1212 = vsel %vm131, %v1211, %v1189
    %v1213 = vsel %vm653, %v1212, %v1193
    %vm1214 = vcmask 523264
    %v1215 = vsel %vm1214, %v1213, %v1197
    %vm1216 = vcmask 654336
    %v1217 = vsel %vm1216, %v1215, %v1201
    %vm1218 = vcmask 785408
    %v1219 = vsel %vm1218, %v1217, %v1205
    %vm1220 = vcmask 916480
    %v1221 = vsel %vm1220, %v1219, %v1209
    %1222 = vst [vmem:[#allocation2] sm:$0xff] %v1221
    // Predicated region
    $region34: #{tpu_custom_call.1} parent=1 // pred_check
      _
    $region35: #{tpu_custom_call.1} parent=1 // pred_check_branch
      %1224 = sbr.rel (0) target = $region37
    $region36: #{tpu_custom_call.1} parent=1 // pred_region
      %1226 = vsyncadd [#allocation3], 0
      %s1228 = sshll.u32 [#allocation2], 4
      %s1229 = int_to_ptr.vmem [resolvable:$true] %s1228
      %s1230 = sshll.u32 %s8, 4
      %s1231 = int_to_ptr.hbm [resolvable:$true] %s1230
      %1233 = dma.vmem_to_hbm [thread:$0]  %s1229, 128, %s1231, [#allocation3]
    $region37: #{tpu_custom_call.1} parent=1 // pred_fallthru
      _
    // Predicated region
    $region38: #{tpu_custom_call.1} parent=1 // pred_check
      _
    $region39: #{tpu_custom_call.1} parent=1 // pred_check_branch
      %1235 = sbr.rel (0) target = $region41
    $region40: #{tpu_custom_call.1} parent=1 // pred_region
      %1237 = dma.done [#allocation3], 128
    $region41: #{tpu_custom_call.1} parent=1 // pred_fallthru
      _
    %1238 = vsyncpa [#allocation3], 1

</llo_original>
